<compile_context>
chip_gen: v7x
topology: tpu7x:2x2x1
jax: 0.10.0
libtpu: 0.0.40
codegen_flags: <defaults>
</compile_context>

<pallas_src>
import jax
import jax.numpy as jnp
import numpy as np
from jax.experimental import pallas as pl
from jax.experimental.pallas import tpu as pltpu

# ----------------------------- configuration --------------------------------
B = 2            # batch
L = 16           # sequence length
D_IN = 64        # input_dims
D_OUT = 128      # output_dims
N_GROUPS = 16
# hidden_dims = max(n_groups * (output_dims // 4 // n_groups), n_groups)
H = max(N_GROUPS * (D_OUT // 4 // N_GROUPS), N_GROUPS)   # = 32
GS = H // N_GROUPS                                        # channels per group = 2
EPS = 1e-5

R = B * L        # flattened rows processed in the single kernel step
DP = 128         # hidden dim padded to a full lane width

# row offsets inside the packed 128-lane constant slab
_WC0, _WC1 = 0, 3 * DP              # fused conv weight      [0, 384)
_WO0, _WO1 = _WC1, _WC1 + DP        # output_proj weight     [384, 512)
_GM0, _GM1 = _WO1, _WO1 + DP        # group-membership mat   [512, 640)
_VE0, _VE1 = _GM1, _GM1 + 8         # packed channel vectors [640, 648)
SLAB_ROWS = _VE1                    # 648 (multiple of 8)


def _hardswish(v):
    return v * jnp.clip(v + 3.0, 0.0, 6.0) * (1.0 / 6.0)


# ------------------------------- the kernel ---------------------------------
def bottleneck_kernel(x_ref, wis_ref, slab_ref, rs2_ref, shift_ref, o_ref):
    x = x_ref[...]                       # (R, D_IN)
    rs2 = rs2_ref[...]                   # (2R, 2R)  blockdiag(same-sample 0/1)
    shift = shift_ref[...]               # (2R, R)   [Sprev ; Snext], zero at seq ends
    gmat = slab_ref[_GM0:_GM1, :]        # (DP, DP)  group membership / (L*GS)
    vec = slab_ref[_VE0:_VE1, :]         # (8, DP)   packed per-channel vectors

    g1 = vec[0:1]; b1 = vec[1:2]
    g2 = vec[2:3]; b2 = vec[3:4]
    bs = vec[4:5]; gl = vec[5:6]; bl = vec[6:7]

    def group_norm(h, gamma, beta):
        # per-(sample, group) mean / mean-square broadcast back to (row, chan):
        #   rows  -> per-sample sums via the 0/1 same-sample matrix (h and h^2
        #            stacked along sublanes so one matmul pair serves both)
        #   lanes -> per-group means via the pre-scaled membership matrix
        stats = jnp.concatenate([h, h * h], axis=0)                        # (2R, DP)
        ssum = jnp.dot(rs2, stats, preferred_element_type=jnp.float32)     # (2R, DP)
        gm = jnp.dot(ssum, gmat, preferred_element_type=jnp.float32)       # (2R, DP)
        mean = gm[:R]
        var = jnp.maximum(gm[R:] - mean * mean, 0.0)
        return (h - mean) * jax.lax.rsqrt(var + EPS) * gamma + beta

    # ---- input_proj + shortcut fused into one matmul ----
    xw = jnp.dot(x, wis_ref[...], preferred_element_type=jnp.float32)      # (R, 2*DP)
    h = xw[:, :DP]
    s = xw[:, DP:] + bs

    # ---- conv block: GN -> Hardswish -> Conv1d(k=3, p=1) -> GN -> Hardswish ----
    h = _hardswish(group_norm(h, g1, b1))

    # neighbour rows via one small matmul (zero-padded at sample boundaries)
    sh = jnp.dot(shift, h, preferred_element_type=jnp.float32)             # (2R, DP)
    hcat = jnp.concatenate([sh[:R], h, sh[R:]], axis=1)                    # (R, 3*DP)
    h = jnp.dot(hcat, slab_ref[_WC0:_WC1, :],
                preferred_element_type=jnp.float32)                        # (R, DP)

    h = _hardswish(group_norm(h, g2, b2))

    # ---- output_proj ----
    h = jnp.dot(h, slab_ref[_WO0:_WO1, :],
                preferred_element_type=jnp.float32)                        # (R, D_OUT)

    # ---- residual add -> LayerNorm -> Hardswish ----
    y = h + s
    mu = jnp.mean(y, axis=-1, keepdims=True)
    var = jnp.mean((y - mu) * (y - mu), axis=-1, keepdims=True)
    y = (y - mu) * jax.lax.rsqrt(var + EPS) * gl + bl
    o_ref[...] = _hardswish(y).astype(o_ref.dtype)


# --------------------------- parameter packing --------------------------------
def pack_params(raw):
    (wi, conv_w, g1, b1, g2, b2, wo, ws, bs, gl, bl) = raw
    f32 = jnp.float32

    # input_proj (padded to DP lanes) fused with the shortcut weight
    wis = jnp.concatenate([jnp.pad(wi, ((0, 0), (0, DP - H))), ws], axis=1)   # (D_IN, 2*DP)

    # conv taps as one (3*DP, DP) weight; tap k multiplies h[l + k - 1]
    pad_hh = lambda w: jnp.pad(w, ((0, DP - H), (0, DP - H)))
    wc = jnp.concatenate([pad_hh(conv_w[:, :, 0].T),                          # tap for h[l-1]
                          pad_hh(conv_w[:, :, 1].T),                          # tap for h[l]
                          pad_hh(conv_w[:, :, 2].T)], axis=0)                 # (3*DP, DP)

    wo_p = jnp.pad(wo, ((0, DP - H), (0, 0)))                                 # (DP, D_OUT)

    # group membership (zero for padded channels), pre-scaled by 1/(L*GS)
    grp = jnp.arange(DP) // GS
    valid = jnp.arange(DP) < H
    gmat_s = ((grp[:, None] == grp[None, :])
              & valid[:, None] & valid[None, :]).astype(f32) / (L * GS)       # (DP, DP)

    # packed per-channel vectors
    pad_vec = lambda v: jnp.pad(v, (0, DP - v.shape[0]))
    vecs = jnp.stack([pad_vec(g1), pad_vec(b1), pad_vec(g2), pad_vec(b2),
                      bs, gl, bl, jnp.zeros((DP,), f32)], axis=0)             # (8, DP)

    slab = jnp.concatenate([wc, wo_p, gmat_s, vecs], axis=0)                  # (648, DP)

    # per-sample row-sum matrix, block-diagonal over the [h ; h*h] stack
    samp = jnp.arange(R) // L
    rowsum = (samp[:, None] == samp[None, :]).astype(f32)                     # (R, R)
    rs2 = jnp.kron(jnp.eye(2, dtype=f32), rowsum)                             # (2R, 2R)

    # shift matrices: out[l] = h[l-1] / h[l+1], zero across sample boundaries
    idx = jnp.arange(R)
    same = samp[:, None] == samp[None, :]
    sprev = (same & (idx[None, :] == idx[:, None] - 1)).astype(f32)           # (R, R)
    snext = (same & (idx[None, :] == idx[:, None] + 1)).astype(f32)           # (R, R)
    shift = jnp.concatenate([sprev, snext], axis=0)                           # (2R, R)

    return (wis, slab, rs2, shift)


# ------------------------------ wrapper --------------------------------------
def residual_bottleneck_block(x, packed):
    (wis, slab, rs2, shift) = packed
    x2 = x.reshape(R, D_IN)
    vmem = pl.BlockSpec(memory_space=pltpu.MemorySpace.VMEM)
    y = pl.pallas_call(
        bottleneck_kernel,
        out_shape=jax.ShapeDtypeStruct((R, D_OUT), jnp.float32),
        in_specs=[vmem] * 5,
        out_specs=vmem,
    )(x2, wis, slab, rs2, shift)
    return y.reshape(B, L, D_OUT)


# --------------------------- pure-JAX reference ------------------------------
def reference(x, raw):
    (wi, conv_w, g1, b1, g2, b2, wo, ws, bs, gl, bl) = raw

    def gn(h, gamma, beta):
        b_, l_, c_ = h.shape
        hg = h.reshape(b_, l_, N_GROUPS, GS)
        mean = hg.mean(axis=(1, 3), keepdims=True)
        var = ((hg - mean) ** 2).mean(axis=(1, 3), keepdims=True)
        hn = (hg - mean) / jnp.sqrt(var + EPS)
        return hn.reshape(b_, l_, c_) * gamma + beta

    hs = lambda v: v * jnp.clip(v + 3.0, 0.0, 6.0) / 6.0

    h = x @ wi
    h = hs(gn(h, g1, b1))
    h_prev = jnp.pad(h, ((0, 0), (1, 0), (0, 0)))[:, :L]
    h_next = jnp.pad(h, ((0, 0), (0, 1), (0, 0)))[:, 1:]
    h = (h_prev @ conv_w[:, :, 0].T + h @ conv_w[:, :, 1].T
         + h_next @ conv_w[:, :, 2].T)
    h = hs(gn(h, g2, b2))
    h = h @ wo
    s = x @ ws + bs
    y = h + s
    mu = y.mean(axis=-1, keepdims=True)
    var = ((y - mu) ** 2).mean(axis=-1, keepdims=True)
    y = (y - mu) / jnp.sqrt(var + EPS) * gl + bl
    return hs(y)


# ----------------------------------- main -------------------------------------
if __name__ == "__main__":
    key = jax.random.PRNGKey(0)
    ks = jax.random.split(key, 12)

    x = jax.random.normal(ks[0], (B, L, D_IN), jnp.float32)

    # Synthetic, deterministic parameters (Linear weights stored transposed for
    # right-multiplication; Conv1d weight in PyTorch (out, in, k) layout).
    wi = 0.1 * jax.random.normal(ks[1], (D_IN, H), jnp.float32)
    conv_w = 0.1 * jax.random.normal(ks[2], (H, H, 3), jnp.float32)
    g1 = 1.0 + 0.1 * jax.random.normal(ks[3], (H,), jnp.float32)
    b1 = 0.1 * jax.random.normal(ks[4], (H,), jnp.float32)
    g2 = 1.0 + 0.1 * jax.random.normal(ks[5], (H,), jnp.float32)
    b2 = 0.1 * jax.random.normal(ks[6], (H,), jnp.float32)
    wo = 0.1 * jax.random.normal(ks[7], (H, D_OUT), jnp.float32)
    ws = 0.1 * jax.random.normal(ks[8], (D_IN, D_OUT), jnp.float32)
    bs = 0.1 * jax.random.normal(ks[9], (D_OUT,), jnp.float32)
    gl = 1.0 + 0.1 * jax.random.normal(ks[10], (D_OUT,), jnp.float32)
    bl = 0.1 * jax.random.normal(ks[11], (D_OUT,), jnp.float32)

    raw = (wi, conv_w, g1, b1, g2, b2, wo, ws, bs, gl, bl)
    packed = pack_params(raw)

    out = jax.block_until_ready(residual_bottleneck_block(x, packed))

    ref = reference(x, raw)
    np.testing.assert_allclose(np.asarray(out), np.asarray(ref),
                               rtol=5e-4, atol=5e-4)
    print("KERNEL_OK")
</pallas_src>

<mosaic_0001>
module attributes {stable_mosaic.version = 11 : i64} {
  func.func @bottleneck_kernel(%arg0: memref<32x64xf32, #tpu.memory_space<vmem>>, %arg1: memref<64x256xf32, #tpu.memory_space<vmem>>, %arg2: memref<648x128xf32, #tpu.memory_space<vmem>>, %arg3: memref<64x64xf32, #tpu.memory_space<vmem>>, %arg4: memref<64x32xf32, #tpu.memory_space<vmem>>, %arg5: memref<32x128xf32, #tpu.memory_space<vmem>>) attributes {dimension_semantics = [], scalar_prefetch = 0 : i64, scratch_operands = 0 : i64, tpu.core_type = #tpu.core_type<tc>} {
    %c0 = arith.constant 0 : index
    %c0_0 = arith.constant 0 : index
    %0 = vector.load %arg0[%c0, %c0_0] : memref<32x64xf32, #tpu.memory_space<vmem>>, vector<32x64xf32>
    %c0_1 = arith.constant 0 : index
    %c0_2 = arith.constant 0 : index
    %1 = vector.load %arg3[%c0_1, %c0_2] : memref<64x64xf32, #tpu.memory_space<vmem>>, vector<64x64xf32>
    %c0_3 = arith.constant 0 : index
    %c0_4 = arith.constant 0 : index
    %2 = vector.load %arg4[%c0_3, %c0_4] : memref<64x32xf32, #tpu.memory_space<vmem>>, vector<64x32xf32>
    %c512 = arith.constant 512 : index
    %c0_5 = arith.constant 0 : index
    %3 = vector.load %arg2[%c512, %c0_5] : memref<648x128xf32, #tpu.memory_space<vmem>>, vector<128x128xf32>
    %c640 = arith.constant 640 : index
    %c0_6 = arith.constant 0 : index
    %4 = vector.load %arg2[%c640, %c0_6] : memref<648x128xf32, #tpu.memory_space<vmem>>, vector<8x128xf32>
    %5 = vector.extract_strided_slice %4 {offsets = [0, 0], sizes = [1, 128], strides = [1, 1]} : vector<8x128xf32> to vector<1x128xf32>
    %6 = vector.extract_strided_slice %4 {offsets = [1, 0], sizes = [1, 128], strides = [1, 1]} : vector<8x128xf32> to vector<1x128xf32>
    %7 = vector.extract_strided_slice %4 {offsets = [2, 0], sizes = [1, 128], strides = [1, 1]} : vector<8x128xf32> to vector<1x128xf32>
    %8 = vector.extract_strided_slice %4 {offsets = [3, 0], sizes = [1, 128], strides = [1, 1]} : vector<8x128xf32> to vector<1x128xf32>
    %9 = vector.extract_strided_slice %4 {offsets = [4, 0], sizes = [1, 128], strides = [1, 1]} : vector<8x128xf32> to vector<1x128xf32>
    %10 = vector.extract_strided_slice %4 {offsets = [5, 0], sizes = [1, 128], strides = [1, 1]} : vector<8x128xf32> to vector<1x128xf32>
    %11 = vector.extract_strided_slice %4 {offsets = [6, 0], sizes = [1, 128], strides = [1, 1]} : vector<8x128xf32> to vector<1x128xf32>
    %c0_7 = arith.constant 0 : index
    %c0_8 = arith.constant 0 : index
    %12 = vector.load %arg1[%c0_7, %c0_8] : memref<64x256xf32, #tpu.memory_space<vmem>>, vector<64x256xf32>
    %cst = arith.constant dense<0.000000e+00> : vector<32x256xf32>
    %13 = tpu.matmul %0, %12, %cst {dimension_numbers = #tpu.dot_dimension_numbers<[1], [0], [0], [1], [0, 0, 1, 1], [], []>} : vector<32x64xf32>, vector<64x256xf32>, vector<32x256xf32> -> vector<32x256xf32>
    %14 = vector.extract_strided_slice %13 {offsets = [0, 0], sizes = [32, 128], strides = [1, 1]} : vector<32x256xf32> to vector<32x128xf32>
    %15 = vector.extract_strided_slice %13 {offsets = [0, 128], sizes = [32, 128], strides = [1, 1]} : vector<32x256xf32> to vector<32x128xf32>
    %16 = vector.broadcast %9 : vector<1x128xf32> to vector<32x128xf32>
    %17 = arith.addf %15, %16 : vector<32x128xf32>
    %18 = arith.mulf %14, %14 : vector<32x128xf32>
    %19 = tpu.concatenate %14, %18 in 0 : vector<32x128xf32>, vector<32x128xf32> -> vector<64x128xf32>
    %cst_9 = arith.constant dense<0.000000e+00> : vector<64x128xf32>
    %20 = tpu.matmul %1, %19, %cst_9 {dimension_numbers = #tpu.dot_dimension_numbers<[1], [0], [0], [1], [0, 0, 1, 1], [], []>} : vector<64x64xf32>, vector<64x128xf32>, vector<64x128xf32> -> vector<64x128xf32>
    %cst_10 = arith.constant dense<0.000000e+00> : vector<64x128xf32>
    %21 = tpu.matmul %20, %3, %cst_10 {dimension_numbers = #tpu.dot_dimension_numbers<[1], [0], [0], [1], [0, 0, 1, 1], [], []>} : vector<64x128xf32>, vector<128x128xf32>, vector<64x128xf32> -> vector<64x128xf32>
    %22 = vector.extract_strided_slice %21 {offsets = [0, 0], sizes = [32, 128], strides = [1, 1]} : vector<64x128xf32> to vector<32x128xf32>
    %23 = vector.extract_strided_slice %21 {offsets = [32, 0], sizes = [32, 128], strides = [1, 1]} : vector<64x128xf32> to vector<32x128xf32>
    %24 = arith.mulf %22, %22 : vector<32x128xf32>
    %25 = arith.subf %23, %24 : vector<32x128xf32>
    %cst_11 = arith.constant 0.000000e+00 : f32
    %26 = vector.broadcast %cst_11 : f32 to vector<32x128xf32>
    %27 = arith.maximumf %25, %26 : vector<32x128xf32>
    %28 = arith.subf %14, %22 : vector<32x128xf32>
    %cst_12 = arith.constant 9.99999974E-6 : f32
    %29 = vector.broadcast %cst_12 : f32 to vector<32x128xf32>
    %30 = arith.addf %27, %29 : vector<32x128xf32>
    %31 = math.rsqrt %30 : vector<32x128xf32>
    %32 = arith.mulf %28, %31 : vector<32x128xf32>
    %33 = vector.broadcast %5 : vector<1x128xf32> to vector<32x128xf32>
    %34 = arith.mulf %32, %33 : vector<32x128xf32>
    %35 = vector.broadcast %6 : vector<1x128xf32> to vector<32x128xf32>
    %36 = arith.addf %34, %35 : vector<32x128xf32>
    %cst_13 = arith.constant 3.000000e+00 : f32
    %37 = vector.broadcast %cst_13 : f32 to vector<32x128xf32>
    %38 = arith.addf %36, %37 : vector<32x128xf32>
    %cst_14 = arith.constant 0.000000e+00 : f32
    %cst_15 = arith.constant 6.000000e+00 : f32
    %39 = vector.broadcast %cst_14 : f32 to vector<32x128xf32>
    %40 = arith.maximumf %39, %38 : vector<32x128xf32>
    %41 = vector.broadcast %cst_15 : f32 to vector<32x128xf32>
    %42 = arith.minimumf %41, %40 : vector<32x128xf32>
    %43 = arith.mulf %36, %42 : vector<32x128xf32>
    %cst_16 = arith.constant 0.166666672 : f32
    %44 = vector.broadcast %cst_16 : f32 to vector<32x128xf32>
    %45 = arith.mulf %43, %44 : vector<32x128xf32>
    %cst_17 = arith.constant dense<0.000000e+00> : vector<64x128xf32>
    %46 = tpu.matmul %2, %45, %cst_17 {dimension_numbers = #tpu.dot_dimension_numbers<[1], [0], [0], [1], [0, 0, 1, 1], [], []>} : vector<64x32xf32>, vector<32x128xf32>, vector<64x128xf32> -> vector<64x128xf32>
    %47 = vector.extract_strided_slice %46 {offsets = [0, 0], sizes = [32, 128], strides = [1, 1]} : vector<64x128xf32> to vector<32x128xf32>
    %48 = vector.extract_strided_slice %46 {offsets = [32, 0], sizes = [32, 128], strides = [1, 1]} : vector<64x128xf32> to vector<32x128xf32>
    %49 = tpu.concatenate %47, %45, %48 in 1 : vector<32x128xf32>, vector<32x128xf32>, vector<32x128xf32> -> vector<32x384xf32>
    %c0_18 = arith.constant 0 : index
    %c0_19 = arith.constant 0 : index
    %50 = vector.load %arg2[%c0_18, %c0_19] : memref<648x128xf32, #tpu.memory_space<vmem>>, vector<384x128xf32>
    %cst_20 = arith.constant dense<0.000000e+00> : vector<32x128xf32>
    %51 = tpu.matmul %49, %50, %cst_20 {dimension_numbers = #tpu.dot_dimension_numbers<[1], [0], [0], [1], [0, 0, 1, 1], [], []>} : vector<32x384xf32>, vector<384x128xf32>, vector<32x128xf32> -> vector<32x128xf32>
    %52 = arith.mulf %51, %51 : vector<32x128xf32>
    %53 = tpu.concatenate %51, %52 in 0 : vector<32x128xf32>, vector<32x128xf32> -> vector<64x128xf32>
    %cst_21 = arith.constant dense<0.000000e+00> : vector<64x128xf32>
    %54 = tpu.matmul %1, %53, %cst_21 {dimension_numbers = #tpu.dot_dimension_numbers<[1], [0], [0], [1], [0, 0, 1, 1], [], []>} : vector<64x64xf32>, vector<64x128xf32>, vector<64x128xf32> -> vector<64x128xf32>
    %cst_22 = arith.constant dense<0.000000e+00> : vector<64x128xf32>
    %55 = tpu.matmul %54, %3, %cst_22 {dimension_numbers = #tpu.dot_dimension_numbers<[1], [0], [0], [1], [0, 0, 1, 1], [], []>} : vector<64x128xf32>, vector<128x128xf32>, vector<64x128xf32> -> vector<64x128xf32>
    %56 = vector.extract_strided_slice %55 {offsets = [0, 0], sizes = [32, 128], strides = [1, 1]} : vector<64x128xf32> to vector<32x128xf32>
    %57 = vector.extract_strided_slice %55 {offsets = [32, 0], sizes = [32, 128], strides = [1, 1]} : vector<64x128xf32> to vector<32x128xf32>
    %58 = arith.mulf %56, %56 : vector<32x128xf32>
    %59 = arith.subf %57, %58 : vector<32x128xf32>
    %cst_23 = arith.constant 0.000000e+00 : f32
    %60 = vector.broadcast %cst_23 : f32 to vector<32x128xf32>
    %61 = arith.maximumf %59, %60 : vector<32x128xf32>
    %62 = arith.subf %51, %56 : vector<32x128xf32>
    %cst_24 = arith.constant 9.99999974E-6 : f32
    %63 = vector.broadcast %cst_24 : f32 to vector<32x128xf32>
    %64 = arith.addf %61, %63 : vector<32x128xf32>
    %65 = math.rsqrt %64 : vector<32x128xf32>
    %66 = arith.mulf %62, %65 : vector<32x128xf32>
    %67 = vector.broadcast %7 : vector<1x128xf32> to vector<32x128xf32>
    %68 = arith.mulf %66, %67 : vector<32x128xf32>
    %69 = vector.broadcast %8 : vector<1x128xf32> to vector<32x128xf32>
    %70 = arith.addf %68, %69 : vector<32x128xf32>
    %cst_25 = arith.constant 3.000000e+00 : f32
    %71 = vector.broadcast %cst_25 : f32 to vector<32x128xf32>
    %72 = arith.addf %70, %71 : vector<32x128xf32>
    %cst_26 = arith.constant 0.000000e+00 : f32
    %cst_27 = arith.constant 6.000000e+00 : f32
    %73 = vector.broadcast %cst_26 : f32 to vector<32x128xf32>
    %74 = arith.maximumf %73, %72 : vector<32x128xf32>
    %75 = vector.broadcast %cst_27 : f32 to vector<32x128xf32>
    %76 = arith.minimumf %75, %74 : vector<32x128xf32>
    %77 = arith.mulf %70, %76 : vector<32x128xf32>
    %cst_28 = arith.constant 0.166666672 : f32
    %78 = vector.broadcast %cst_28 : f32 to vector<32x128xf32>
    %79 = arith.mulf %77, %78 : vector<32x128xf32>
    %c384 = arith.constant 384 : index
    %c0_29 = arith.constant 0 : index
    %80 = vector.load %arg2[%c384, %c0_29] : memref<648x128xf32, #tpu.memory_space<vmem>>, vector<128x128xf32>
    %cst_30 = arith.constant dense<0.000000e+00> : vector<32x128xf32>
    %81 = tpu.matmul %79, %80, %cst_30 {dimension_numbers = #tpu.dot_dimension_numbers<[1], [0], [0], [1], [0, 0, 1, 1], [], []>} : vector<32x128xf32>, vector<128x128xf32>, vector<32x128xf32> -> vector<32x128xf32>
    %82 = arith.addf %81, %17 : vector<32x128xf32>
    %cst_31 = arith.constant dense<0.000000e+00> : vector<32xf32>
    %83 = vector.multi_reduction <add>, %82, %cst_31 [1] : vector<32x128xf32> to vector<32xf32>
    %84 = vector.shape_cast %83 : vector<32xf32> to vector<32x1xf32>
    %cst_32 = arith.constant 1.280000e+02 : f32
    %85 = vector.broadcast %cst_32 : f32 to vector<32x1xf32>
    %86 = arith.divf %84, %85 : vector<32x1xf32>
    %87 = vector.broadcast %86 : vector<32x1xf32> to vector<32x128xf32>
    %88 = arith.subf %82, %87 : vector<32x128xf32>
    %89 = vector.broadcast %86 : vector<32x1xf32> to vector<32x128xf32>
    %90 = arith.subf %82, %89 : vector<32x128xf32>
    %91 = arith.mulf %88, %90 : vector<32x128xf32>
    %cst_33 = arith.constant dense<0.000000e+00> : vector<32xf32>
    %92 = vector.multi_reduction <add>, %91, %cst_33 [1] : vector<32x128xf32> to vector<32xf32>
    %93 = vector.shape_cast %92 : vector<32xf32> to vector<32x1xf32>
    %cst_34 = arith.constant 1.280000e+02 : f32
    %94 = vector.broadcast %cst_34 : f32 to vector<32x1xf32>
    %95 = arith.divf %93, %94 : vector<32x1xf32>
    %96 = vector.broadcast %86 : vector<32x1xf32> to vector<32x128xf32>
    %97 = arith.subf %82, %96 : vector<32x128xf32>
    %cst_35 = arith.constant 9.99999974E-6 : f32
    %98 = vector.broadcast %cst_35 : f32 to vector<32x1xf32>
    %99 = arith.addf %95, %98 : vector<32x1xf32>
    %100 = math.rsqrt %99 : vector<32x1xf32>
    %101 = vector.broadcast %100 : vector<32x1xf32> to vector<32x128xf32>
    %102 = arith.mulf %97, %101 : vector<32x128xf32>
    %103 = vector.broadcast %10 : vector<1x128xf32> to vector<32x128xf32>
    %104 = arith.mulf %102, %103 : vector<32x128xf32>
    %105 = vector.broadcast %11 : vector<1x128xf32> to vector<32x128xf32>
    %106 = arith.addf %104, %105 : vector<32x128xf32>
    %cst_36 = arith.constant 3.000000e+00 : f32
    %107 = vector.broadcast %cst_36 : f32 to vector<32x128xf32>
    %108 = arith.addf %106, %107 : vector<32x128xf32>
    %cst_37 = arith.constant 0.000000e+00 : f32
    %cst_38 = arith.constant 6.000000e+00 : f32
    %109 = vector.broadcast %cst_37 : f32 to vector<32x128xf32>
    %110 = arith.maximumf %109, %108 : vector<32x128xf32>
    %111 = vector.broadcast %cst_38 : f32 to vector<32x128xf32>
    %112 = arith.minimumf %111, %110 : vector<32x128xf32>
    %113 = arith.mulf %106, %112 : vector<32x128xf32>
    %cst_39 = arith.constant 0.166666672 : f32
    %114 = vector.broadcast %cst_39 : f32 to vector<32x128xf32>
    %115 = arith.mulf %113, %114 : vector<32x128xf32>
    %c0_40 = arith.constant 0 : index
    %c0_41 = arith.constant 0 : index
    %116 = vector.load %arg5[%c0_40, %c0_41] : memref<32x128xf32, #tpu.memory_space<vmem>>, vector<32x128xf32>
    tpu.vector_store %arg5[%c0_40, %c0_41], %115 {strides = array<i32>} : memref<32x128xf32, #tpu.memory_space<vmem>>, vector<32x128xf32>,
    return
  }
}

</mosaic_0001>

<llo_original>
// kernel: tpu_custom_call.1
$region0: #{tpu_custom_call.1}
  #allocation0 [shape = 'u32[]', space=smem, size = 0x4, offset = 0x4, fixed_abs, tag = 'smem constant byte address 0x4 - core index']
  #allocation1 [shape = 'u32[144,128]{1,0:T(1,128)}', space=vmem, size = 0x12000, scoped, tag = 'internal scratch']
  %s0 = inlined_call_operand.vmem [shape: f32[32,64], index: 0, kind: input, shape index: {}]
  %s1 = inlined_call_operand.hbm [shape: f32[64,256], index: 1, kind: input, shape index: {}]
  %s2 = inlined_call_operand.hbm [shape: f32[648,128], index: 2, kind: input, shape index: {}]
  %s3 = inlined_call_operand.vmem [shape: f32[64,64], index: 3, kind: input, shape index: {}]
  %s4 = inlined_call_operand.vmem [shape: f32[64,32], index: 4, kind: input, shape index: {}]
  %s5 = inlined_call_operand.hbm [shape: f32[32,128], index: 5, kind: output, shape index: {}]
  %s6 = sld [smem:[#allocation0]]
  $region38: #{tpu_custom_call.1} parent=0
    _
  %s8 = ssub.s32 1, %s6
  %s9 = scalar_select 0, %s8, %s6
  $region1: #{tpu_custom_call.1} parent=0
    #allocation2 [shape = 'u8[65536]{0}', space=vmem, size = 0x10000, scoped, tag = 'input window, operand 1, single buffered']
    #allocation3 [shape = 's32[1]{0}', space=sflag, size = 0x4, scoped, tag = 'scoped memory for tpu_custom_call.1']
    #allocation4 [shape = 's32[1]{0}', space=sflag, size = 0x4, scoped, tag = 'scoped memory for tpu_custom_call.1']
    #allocation5 [shape = 'u8[331776]{0}', space=vmem, size = 0x51000, scoped, tag = 'input window, operand 2, single buffered']
    #allocation6 [shape = 's32[1]{0}', space=sflag, size = 0x4, scoped, tag = 'scoped memory for tpu_custom_call.1']
    #allocation7 [shape = 'u8[16384]{0}', space=vmem, size = 0x4000, scoped, tag = 'output window, operand 0, single buffered']
    %10 = vsyncpa [#allocation3], 0
    %11 = vsyncpa [#allocation6], 0
    %12 = vsyncpa [#allocation4], 0
    // Predicated region
    $region2: #{tpu_custom_call.1} parent=1 // pred_check
      _
    $region3: #{tpu_custom_call.1} parent=1 // pred_check_branch
      %14 = sbr.rel (0) target = $region5
    $region4: #{tpu_custom_call.1} parent=1 // pred_region
      _
    $region5: #{tpu_custom_call.1} parent=1 // pred_fallthru
      _
    // Predicated region
    $region6: #{tpu_custom_call.1} parent=1 // pred_check
      _
    $region7: #{tpu_custom_call.1} parent=1 // pred_check_branch
      %16 = sbr.rel (0) target = $region9
    $region8: #{tpu_custom_call.1} parent=1 // pred_region
      %s18 = ssub.s32 2048, 2048
      %19 = vsyncadd [#allocation3], %s18
      %s20 = sshll.u32 [#allocation2], 4
      %s21 = int_to_ptr.vmem [resolvable:$true] %s20
      %26 = dma.hbm_to_vmem [thread:$0]  %s1, 2048, %s21, [#allocation3], 256, 256, 16
    $region9: #{tpu_custom_call.1} parent=1 // pred_fallthru
      _
    // Predicated region
    $region10: #{tpu_custom_call.1} parent=1 // pred_check
      _
    $region11: #{tpu_custom_call.1} parent=1 // pred_check_branch
      %28 = sbr.rel (0) target = $region13
    $region12: #{tpu_custom_call.1} parent=1 // pred_region
      %s30 = ssub.s32 10368, 10368
      %31 = vsyncadd [#allocation6], %s30
      %s32 = sshll.u32 [#allocation5], 4
      %s33 = int_to_ptr.vmem [resolvable:$true] %s32
      %38 = dma.hbm_to_vmem [thread:$0]  %s2, 10368, %s33, [#allocation6], 128, 128, 8
    $region13: #{tpu_custom_call.1} parent=1 // pred_fallthru
      _
    // Predicated region
    $region14: #{tpu_custom_call.1} parent=1 // pred_check
      _
    $region15: #{tpu_custom_call.1} parent=1 // pred_check_branch
      %40 = sbr.rel (0) target = $region17
    $region16: #{tpu_custom_call.1} parent=1 // pred_region
      _
    $region17: #{tpu_custom_call.1} parent=1 // pred_fallthru
      _
    // Predicated region
    $region18: #{tpu_custom_call.1} parent=1 // pred_check
      _
    $region19: #{tpu_custom_call.1} parent=1 // pred_check_branch
      %42 = sbr.rel (0) target = $region21
    $region20: #{tpu_custom_call.1} parent=1 // pred_region
      _
    $region21: #{tpu_custom_call.1} parent=1 // pred_fallthru
      _
    // Predicated region
    $region22: #{tpu_custom_call.1} parent=1 // pred_check
      _
    $region23: #{tpu_custom_call.1} parent=1 // pred_check_branch
      %44 = sbr.rel (0) target = $region25
    $region24: #{tpu_custom_call.1} parent=1 // pred_region
      %45 = dma.done [#allocation3], 2048
    $region25: #{tpu_custom_call.1} parent=1 // pred_fallthru
      _
    // Predicated region
    $region26: #{tpu_custom_call.1} parent=1 // pred_check
      _
    $region27: #{tpu_custom_call.1} parent=1 // pred_check_branch
      %47 = sbr.rel (0) target = $region29
    $region28: #{tpu_custom_call.1} parent=1 // pred_region
      %48 = dma.done [#allocation6], 10368
    $region29: #{tpu_custom_call.1} parent=1 // pred_fallthru
      _
    %v49 = vld [vmem:[%s0] sm:$0xff]
    %v50 = vld [vmem:[%s0 + $0x8] sm:$0xff]
    %v51 = vld [vmem:[%s0 + $0x10] sm:$0xff]
    %v52 = vld [vmem:[%s0 + $0x18] sm:$0xff]
    %v53 = vld [vmem:[%s3] sm:$0xff]
    %v54 = vld [vmem:[%s3 + $0x8] sm:$0xff]
    %v55 = vld [vmem:[%s3 + $0x10] sm:$0xff]
    %v56 = vld [vmem:[%s3 + $0x18] sm:$0xff]
    %v57 = vld [vmem:[%s3 + $0x20] sm:$0xff]
    %v58 = vld [vmem:[%s3 + $0x28] sm:$0xff]
    %v59 = vld [vmem:[%s3 + $0x30] sm:$0xff]
    %v60 = vld [vmem:[%s3 + $0x38] sm:$0xff]
    %v61 = vld [vmem:[%s4] sm:$0xff]
    %v62 = vld [vmem:[%s4 + $0x8] sm:$0xff]
    %v63 = vld [vmem:[%s4 + $0x10] sm:$0xff]
    %v64 = vld [vmem:[%s4 + $0x18] sm:$0xff]
    %v65 = vld [vmem:[%s4 + $0x20] sm:$0xff]
    %v66 = vld [vmem:[%s4 + $0x28] sm:$0xff]
    %v67 = vld [vmem:[%s4 + $0x30] sm:$0xff]
    %v68 = vld [vmem:[%s4 + $0x38] sm:$0xff]
    %v69 = vld [vmem:[#allocation5 + $0x200] sm:$0xff]
    %v70 = vld [vmem:[#allocation5 + $0x208] sm:$0xff]
    %v71 = vld [vmem:[#allocation5 + $0x210] sm:$0xff]
    %v72 = vld [vmem:[#allocation5 + $0x218] sm:$0xff]
    %v73 = vld [vmem:[#allocation5 + $0x220] sm:$0xff]
    %v74 = vld [vmem:[#allocation5 + $0x228] sm:$0xff]
    %v75 = vld [vmem:[#allocation5 + $0x230] sm:$0xff]
    %v76 = vld [vmem:[#allocation5 + $0x238] sm:$0xff]
    %v77 = vld [vmem:[#allocation5 + $0x240] sm:$0xff]
    %v78 = vld [vmem:[#allocation5 + $0x248] sm:$0xff]
    %v79 = vld [vmem:[#allocation5 + $0x250] sm:$0xff]
    %v80 = vld [vmem:[#allocation5 + $0x258] sm:$0xff]
    %v81 = vld [vmem:[#allocation5 + $0x260] sm:$0xff]
    %v82 = vld [vmem:[#allocation5 + $0x268] sm:$0xff]
    %v83 = vld [vmem:[#allocation5 + $0x270] sm:$0xff]
    %v84 = vld [vmem:[#allocation5 + $0x278] sm:$0xff]
    %v85 = vld [vmem:[#allocation5 + $0x280] sm:$0xff]
    %v86 = vld [vmem:[#allocation2] sm:$0xff]
    %v87 = vld [vmem:[#allocation2 + $0x8] sm:$0xff]
    %v88 = vld [vmem:[#allocation2 + $0x10] sm:$0xff]
    %v89 = vld [vmem:[#allocation2 + $0x18] sm:$0xff]
    %v90 = vld [vmem:[#allocation2 + $0x20] sm:$0xff]
    %v91 = vld [vmem:[#allocation2 + $0x28] sm:$0xff]
    %v92 = vld [vmem:[#allocation2 + $0x30] sm:$0xff]
    %v93 = vld [vmem:[#allocation2 + $0x38] sm:$0xff]
    %v94 = vld [vmem:[#allocation2 + $0x40] sm:$0xff]
    %v95 = vld [vmem:[#allocation2 + $0x48] sm:$0xff]
    %v96 = vld [vmem:[#allocation2 + $0x50] sm:$0xff]
    %v97 = vld [vmem:[#allocation2 + $0x58] sm:$0xff]
    %v98 = vld [vmem:[#allocation2 + $0x60] sm:$0xff]
    %v99 = vld [vmem:[#allocation2 + $0x68] sm:$0xff]
    %v100 = vld [vmem:[#allocation2 + $0x70] sm:$0xff]
    %v101 = vld [vmem:[#allocation2 + $0x78] sm:$0xff]
    %vm102 = vcmask 523264
    %v104 = vsel %vm102, %v49, 0
    %v107 = vsel %vm102, %v50, 0
    %v110 = vsel %vm102, %v51, 0
    %v113 = vsel %vm102, %v52, 0
    %115 = vmatprep.subr.mxu0 %v87
    %116 = vmatpush1.msra.mxu0 %v86
    %117 = vmatprep.subr.mxu0 %v89
    %118 = vmatpush1.msra.mxu0 %v88
    %119 = vmatprep.subr.mxu0 %v91
    %120 = vmatpush1.msra.mxu0 %v90
    %121 = vmatprep.subr.mxu0 %v93
    %122 = vmatpush1.msra.mxu0 %v92
    %123 = vmatprep.subr.mxu0 %v95
    %124 = vmatpush1.msra.mxu0 %v94
    %125 = vmatprep.subr.mxu0 %v97
    %126 = vmatpush1.msra.mxu0 %v96
    %127 = vmatprep.subr.mxu0 %v99
    %128 = vmatpush1.msra.mxu0 %v98
    %129 = vmatprep.subr.mxu0 %v101
    %130 = vmatpush1.msra.mxu0 %v100
    %131 = vmatprep.subr.mxu0 0.0
    %132 = vmatpush1.msra.mxu0 0.0
    %133 = vmatprep.subr.mxu0 0.0
    %134 = vmatpush1.msra.mxu0 0.0
    %135 = vmatprep.subr.mxu0 0.0
    %136 = vmatpush1.msra.mxu0 0.0
    %137 = vmatprep.subr.mxu0 0.0
    %138 = vmatpush1.msra.mxu0 0.0
    %139 = vmatprep.subr.mxu0 0.0
    %140 = vmatpush1.msra.mxu0 0.0
    %141 = vmatprep.subr.mxu0 0.0
    %142 = vmatpush1.msra.mxu0 0.0
    %143 = vmatprep.subr.mxu0 0.0
    %144 = vmatpush1.msra.mxu0 0.0
    %145 = vmatprep.subr.mxu0 0.0
    %146 = vmatpush1.msra.mxu0 0.0
    %147 = vmatprep.subr.mxu0 0.0
    %148 = vmatpush1.msra.mxu0 0.0
    %149 = vmatprep.subr.mxu0 0.0
    %150 = vmatpush1.msra.mxu0 0.0
    %151 = vmatprep.subr.mxu0 0.0
    %152 = vmatpush1.msra.mxu0 0.0
    %153 = vmatprep.subr.mxu0 0.0
    %154 = vmatpush1.msra.mxu0 0.0
    %155 = vmatprep.subr.mxu0 0.0
    %156 = vmatpush1.msra.mxu0 0.0
    %157 = vmatprep.subr.mxu0 0.0
    %158 = vmatpush1.msra.mxu0 0.0
    %159 = vmatprep.subr.mxu0 0.0
    %160 = vmatpush1.msra.mxu0 0.0
    %161 = vmatprep.subr.mxu0 0.0
    %162 = vmatpush1.msra.mxu0 0.0
    %163 = vmatprep.subr.mxu0 0.0
    %164 = vmatpush1.msra.mxu0 0.0
    %165 = vmatprep.subr.mxu0 0.0
    %166 = vmatpush1.msra.mxu0 0.0
    %167 = vmatprep.subr.mxu0 0.0
    %168 = vmatpush1.msra.mxu0 0.0
    %169 = vmatprep.subr.mxu0 0.0
    %170 = vmatpush1.msra.mxu0 0.0
    %171 = vmatprep.subr.mxu0 0.0
    %172 = vmatpush1.msra.mxu0 0.0
    %173 = vmatprep.subr.mxu0 0.0
    %174 = vmatpush1.msra.mxu0 0.0
    %175 = vmatprep.subr.mxu0 0.0
    %176 = vmatpush1.msra.mxu0 0.0
    %177 = vmatprep.subr.mxu0 0.0
    %178 = vmatpush1.msra.mxu0 0.0
    %179 = vmatprep.mubr.f32.mxu0 0.0
    %180 = vmatmul.mubr.f32.gmra.mrb[0].mxu0 %v104
    %v181 = vpop.f32.mrb[0].mxu0
    %v182 = vadd.f32 0.0, %v181
    %v183 = vpop.f32.mrb[0].mxu0
    %v184 = vadd.f32 0.0, %v183
    %185 = vmatprep.mubr.f32.mxu0 0.0
    %186 = vmatmul.mubr.f32.gmra.mrb[0].mxu0 %v107
    %v187 = vpop.f32.mrb[0].mxu0
    %v188 = vadd.f32 0.0, %v187
    %v189 = vpop.f32.mrb[0].mxu0
    %v190 = vadd.f32 0.0, %v189
    %191 = vmatprep.mubr.f32.mxu0 0.0
    %192 = vmatmul.mubr.f32.gmra.mrb[0].mxu0 %v110
    %v193 = vpop.f32.mrb[0].mxu0
    %v194 = vadd.f32 0.0, %v193
    %v195 = vpop.f32.mrb[0].mxu0
    %v196 = vadd.f32 0.0, %v195
    %197 = vmatprep.mubr.f32.mxu0 0.0
    %198 = vmatmul.mubr.f32.gmra.mrb[0].mxu0 %v113
    %v199 = vpop.f32.mrb[0].mxu0
    %v200 = vadd.f32 0.0, %v199
    %v201 = vpop.f32.mrb[0].mxu0
    %v202 = vadd.f32 0.0, %v201
    %203 = vdwg.mxu0
    %v204 = vlaneseq
    %v205 = vshrl.u32 %v204, 7
    %v206 = vsub.s32 4, %v205
    %v207 = vrot.slane %v85, %v206
    %v208 = vadd.f32 %v184, %v207
    %v209 = vadd.f32 %v190, %v207
    %v210 = vadd.f32 %v196, %v207
    %v211 = vadd.f32 %v202, %v207
    %v212 = vmul.f32 %v182, %v182
    %v213 = vmul.f32 %v188, %v188
    %v214 = vmul.f32 %v194, %v194
    %v215 = vmul.f32 %v200, %v200
    %v217 = vsel %vm102, %v53, 0
    %v220 = vsel %vm102, %v54, 0
    %v223 = vsel %vm102, %v55, 0
    %v226 = vsel %vm102, %v56, 0
    %v229 = vsel %vm102, %v57, 0
    %v232 = vsel %vm102, %v58, 0
    %v235 = vsel %vm102, %v59, 0
    %v238 = vsel %vm102, %v60, 0
    %240 = vmatprep.subr.mxu0 0.0
    %241 = vmatpush1.msra.mxu0 %v182
    %242 = vmatprep.subr.mxu0 0.0
    %243 = vmatpush1.msra.mxu0 %v188
    %244 = vmatprep.subr.mxu0 0.0
    %245 = vmatpush1.msra.mxu0 %v194
    %246 = vmatprep.subr.mxu0 0.0
    %247 = vmatpush1.msra.mxu0 %v200
    %248 = vmatprep.subr.mxu0 0.0
    %249 = vmatpush1.msra.mxu0 %v212
    %250 = vmatprep.subr.mxu0 0.0
    %251 = vmatpush1.msra.mxu0 %v213
    %252 = vmatprep.subr.mxu0 0.0
    %253 = vmatpush1.msra.mxu0 %v214
    %254 = vmatprep.subr.mxu0 0.0
    %255 = vmatpush1.msra.mxu0 %v215
    %256 = vmatprep.subr.mxu0 0.0
    %257 = vmatpush1.msra.mxu0 0.0
    %258 = vmatprep.subr.mxu0 0.0
    %259 = vmatpush1.msra.mxu0 0.0
    %260 = vmatprep.subr.mxu0 0.0
    %261 = vmatpush1.msra.mxu0 0.0
    %262 = vmatprep.subr.mxu0 0.0
    %263 = vmatpush1.msra.mxu0 0.0
    %264 = vmatprep.subr.mxu0 0.0
    %265 = vmatpush1.msra.mxu0 0.0
    %266 = vmatprep.subr.mxu0 0.0
    %267 = vmatpush1.msra.mxu0 0.0
    %268 = vmatprep.subr.mxu0 0.0
    %269 = vmatpush1.msra.mxu0 0.0
    %270 = vmatprep.subr.mxu0 0.0
    %271 = vmatpush1.msra.mxu0 0.0
    %272 = vmatprep.subr.mxu0 0.0
    %273 = vmatpush1.msra.mxu0 0.0
    %274 = vmatprep.subr.mxu0 0.0
    %275 = vmatpush1.msra.mxu0 0.0
    %276 = vmatprep.subr.mxu0 0.0
    %277 = vmatpush1.msra.mxu0 0.0
    %278 = vmatprep.subr.mxu0 0.0
    %279 = vmatpush1.msra.mxu0 0.0
    %280 = vmatprep.subr.mxu0 0.0
    %281 = vmatpush1.msra.mxu0 0.0
    %282 = vmatprep.subr.mxu0 0.0
    %283 = vmatpush1.msra.mxu0 0.0
    %284 = vmatprep.subr.mxu0 0.0
    %285 = vmatpush1.msra.mxu0 0.0
    %286 = vmatprep.subr.mxu0 0.0
    %287 = vmatpush1.msra.mxu0 0.0
    %288 = vmatprep.subr.mxu0 0.0
    %289 = vmatpush1.msra.mxu0 0.0
    %290 = vmatprep.subr.mxu0 0.0
    %291 = vmatpush1.msra.mxu0 0.0
    %292 = vmatprep.subr.mxu0 0.0
    %293 = vmatpush1.msra.mxu0 0.0
    %294 = vmatprep.subr.mxu0 0.0
    %295 = vmatpush1.msra.mxu0 0.0
    %296 = vmatprep.subr.mxu0 0.0
    %297 = vmatpush1.msra.mxu0 0.0
    %298 = vmatprep.subr.mxu0 0.0
    %299 = vmatpush1.msra.mxu0 0.0
    %300 = vmatprep.subr.mxu0 0.0
    %301 = vmatpush1.msra.mxu0 0.0
    %302 = vmatprep.subr.mxu0 0.0
    %303 = vmatpush1.msra.mxu0 0.0
    %304 = vmatprep.mubr.f32.mxu0 0.0
    %305 = vmatmul.mubr.f32.gmra.mrb[0].mxu0 %v217
    %v306 = vpop.f32.mrb[0].mxu0
    %v307 = vadd.f32 0.0, %v306
    %v308 = vpop.f32.mrb[0].mxu0
    %309 = vmatprep.mubr.f32.mxu0 0.0
    %310 = vmatmul.mubr.f32.gmra.mrb[0].mxu0 %v220
    %v311 = vpop.f32.mrb[0].mxu0
    %v312 = vadd.f32 0.0, %v311
    %v313 = vpop.f32.mrb[0].mxu0
    %314 = vmatprep.mubr.f32.mxu0 0.0
    %315 = vmatmul.mubr.f32.gmra.mrb[0].mxu0 %v223
    %v316 = vpop.f32.mrb[0].mxu0
    %v317 = vadd.f32 0.0, %v316
    %v318 = vpop.f32.mrb[0].mxu0
    %319 = vmatprep.mubr.f32.mxu0 0.0
    %320 = vmatmul.mubr.f32.gmra.mrb[0].mxu0 %v226
    %v321 = vpop.f32.mrb[0].mxu0
    %v322 = vadd.f32 0.0, %v321
    %v323 = vpop.f32.mrb[0].mxu0
    %324 = vmatprep.mubr.f32.mxu0 0.0
    %325 = vmatmul.mubr.f32.gmra.mrb[0].mxu0 %v229
    %v326 = vpop.f32.mrb[0].mxu0
    %v327 = vadd.f32 0.0, %v326
    %v328 = vpop.f32.mrb[0].mxu0
    %329 = vmatprep.mubr.f32.mxu0 0.0
    %330 = vmatmul.mubr.f32.gmra.mrb[0].mxu0 %v232
    %v331 = vpop.f32.mrb[0].mxu0
    %v332 = vadd.f32 0.0, %v331
    %v333 = vpop.f32.mrb[0].mxu0
    %334 = vmatprep.mubr.f32.mxu0 0.0
    %335 = vmatmul.mubr.f32.gmra.mrb[0].mxu0 %v235
    %v336 = vpop.f32.mrb[0].mxu0
    %v337 = vadd.f32 0.0, %v336
    %v338 = vpop.f32.mrb[0].mxu0
    %339 = vmatprep.mubr.f32.mxu0 0.0
    %340 = vmatmul.mubr.f32.gmra.mrb[0].mxu0 %v238
    %v341 = vpop.f32.mrb[0].mxu0
    %v342 = vadd.f32 0.0, %v341
    %v343 = vpop.f32.mrb[0].mxu0
    %344 = vdwg.mxu0
    %345 = vmatprep.subr.mxu0 0.0
    %346 = vmatpush1.msra.mxu0 %v69
    %347 = vmatprep.subr.mxu0 0.0
    %348 = vmatpush1.msra.mxu0 %v70
    %349 = vmatprep.subr.mxu0 0.0
    %350 = vmatpush1.msra.mxu0 %v71
    %351 = vmatprep.subr.mxu0 0.0
    %352 = vmatpush1.msra.mxu0 %v72
    %353 = vmatprep.subr.mxu0 0.0
    %354 = vmatpush1.msra.mxu0 %v73
    %355 = vmatprep.subr.mxu0 0.0
    %356 = vmatpush1.msra.mxu0 %v74
    %357 = vmatprep.subr.mxu0 0.0
    %358 = vmatpush1.msra.mxu0 %v75
    %359 = vmatprep.subr.mxu0 0.0
    %360 = vmatpush1.msra.mxu0 %v76
    %361 = vmatprep.subr.mxu0 0.0
    %362 = vmatpush1.msra.mxu0 %v77
    %363 = vmatprep.subr.mxu0 0.0
    %364 = vmatpush1.msra.mxu0 %v78
    %365 = vmatprep.subr.mxu0 0.0
    %366 = vmatpush1.msra.mxu0 %v79
    %367 = vmatprep.subr.mxu0 0.0
    %368 = vmatpush1.msra.mxu0 %v80
    %369 = vmatprep.subr.mxu0 0.0
    %370 = vmatpush1.msra.mxu0 %v81
    %371 = vmatprep.subr.mxu0 0.0
    %372 = vmatpush1.msra.mxu0 %v82
    %373 = vmatprep.subr.mxu0 0.0
    %374 = vmatpush1.msra.mxu0 %v83
    %375 = vmatprep.subr.mxu0 0.0
    %376 = vmatpush1.msra.mxu0 %v84
    %377 = vmatprep.subr.mxu0 0.0
    %378 = vmatpush1.msra.mxu0 0.0
    %379 = vmatprep.subr.mxu0 0.0
    %380 = vmatpush1.msra.mxu0 0.0
    %381 = vmatprep.subr.mxu0 0.0
    %382 = vmatpush1.msra.mxu0 0.0
    %383 = vmatprep.subr.mxu0 0.0
    %384 = vmatpush1.msra.mxu0 0.0
    %385 = vmatprep.subr.mxu0 0.0
    %386 = vmatpush1.msra.mxu0 0.0
    %387 = vmatprep.subr.mxu0 0.0
    %388 = vmatpush1.msra.mxu0 0.0
    %389 = vmatprep.subr.mxu0 0.0
    %390 = vmatpush1.msra.mxu0 0.0
    %391 = vmatprep.subr.mxu0 0.0
    %392 = vmatpush1.msra.mxu0 0.0
    %393 = vmatprep.subr.mxu0 0.0
    %394 = vmatpush1.msra.mxu0 0.0
    %395 = vmatprep.subr.mxu0 0.0
    %396 = vmatpush1.msra.mxu0 0.0
    %397 = vmatprep.subr.mxu0 0.0
    %398 = vmatpush1.msra.mxu0 0.0
    %399 = vmatprep.subr.mxu0 0.0
    %400 = vmatpush1.msra.mxu0 0.0
    %401 = vmatprep.subr.mxu0 0.0
    %402 = vmatpush1.msra.mxu0 0.0
    %403 = vmatprep.subr.mxu0 0.0
    %404 = vmatpush1.msra.mxu0 0.0
    %405 = vmatprep.subr.mxu0 0.0
    %406 = vmatpush1.msra.mxu0 0.0
    %407 = vmatprep.subr.mxu0 0.0
    %408 = vmatpush1.msra.mxu0 0.0
    %409 = vmatprep.mubr.f32.mxu0 0.0
    %410 = vmatmul.mubr.f32.gmra.mrb[0].mxu0 %v307
    %v411 = vpop.f32.mrb[0].mxu0
    %v412 = vadd.f32 0.0, %v411
    %v413 = vpop.f32.mrb[0].mxu0
    %414 = vmatprep.mubr.f32.mxu0 0.0
    %415 = vmatmul.mubr.f32.gmra.mrb[0].mxu0 %v312
    %v416 = vpop.f32.mrb[0].mxu0
    %v417 = vadd.f32 0.0, %v416
    %v418 = vpop.f32.mrb[0].mxu0
    %419 = vmatprep.mubr.f32.mxu0 0.0
    %420 = vmatmul.mubr.f32.gmra.mrb[0].mxu0 %v317
    %v421 = vpop.f32.mrb[0].mxu0
    %v422 = vadd.f32 0.0, %v421
    %v423 = vpop.f32.mrb[0].mxu0
    %424 = vmatprep.mubr.f32.mxu0 0.0
    %425 = vmatmul.mubr.f32.gmra.mrb[0].mxu0 %v322
    %v426 = vpop.f32.mrb[0].mxu0
    %v427 = vadd.f32 0.0, %v426
    %v428 = vpop.f32.mrb[0].mxu0
    %429 = vmatprep.mubr.f32.mxu0 0.0
    %430 = vmatmul.mubr.f32.gmra.mrb[0].mxu0 %v327
    %v431 = vpop.f32.mrb[0].mxu0
    %v432 = vadd.f32 0.0, %v431
    %v433 = vpop.f32.mrb[0].mxu0
    %434 = vmatprep.mubr.f32.mxu0 0.0
    %435 = vmatmul.mubr.f32.gmra.mrb[0].mxu0 %v332
    %v436 = vpop.f32.mrb[0].mxu0
    %v437 = vadd.f32 0.0, %v436
    %v438 = vpop.f32.mrb[0].mxu0
    %439 = vmatprep.mubr.f32.mxu0 0.0
    %440 = vmatmul.mubr.f32.gmra.mrb[0].mxu0 %v337
    %v441 = vpop.f32.mrb[0].mxu0
    %v442 = vadd.f32 0.0, %v441
    %v443 = vpop.f32.mrb[0].mxu0
    %444 = vmatprep.mubr.f32.mxu0 0.0
    %445 = vmatmul.mubr.f32.gmra.mrb[0].mxu0 %v342
    %v446 = vpop.f32.mrb[0].mxu0
    %v447 = vadd.f32 0.0, %v446
    %v448 = vpop.f32.mrb[0].mxu0
    %449 = vdwg.mxu0
    %v450 = vmul.f32 %v412, %v412
    %v451 = vmul.f32 %v417, %v417
    %v452 = vmul.f32 %v422, %v422
    %v453 = vmul.f32 %v427, %v427
    %v454 = vsub.f32 %v432, %v450
    %v455 = vsub.f32 %v437, %v451
    %v456 = vsub.f32 %v442, %v452
    %v457 = vsub.f32 %v447, %v453
    %v458 = vmax.f32 %v454, 0.0
    %v459 = vmax.f32 %v455, 0.0
    %v460 = vmax.f32 %v456, 0.0
    %v461 = vmax.f32 %v457, 0.0
    %v462 = vsub.f32 %v182, %v412
    %v463 = vsub.f32 %v188, %v417
    %v464 = vsub.f32 %v194, %v422
    %v465 = vsub.f32 %v200, %v427
    %v466 = vadd.f32 %v458, 1e-05
    %v467 = vadd.f32 %v459, 1e-05
    %v468 = vadd.f32 %v460, 1e-05
    %v469 = vadd.f32 %v461, 1e-05
    %v470 = vrsqrt.pop %v466
    %v471 = vrsqrt.pop %v467
    %v472 = vrsqrt.pop %v468
    %v473 = vrsqrt.pop %v469
    %v474 = vmul.f32 %v462, %v470
    %v475 = vmul.f32 %v463, %v471
    %v476 = vmul.f32 %v464, %v472
    %v477 = vmul.f32 %v465, %v473
    %v478 = vlaneseq
    %v479 = vshrl.u32 %v478, 7
    %v480 = vsub.s32 0, %v479
    %v481 = vrot.slane %v85, %v480
    %v482 = vmul.f32 %v474, %v481
    %v483 = vmul.f32 %v475, %v481
    %v484 = vmul.f32 %v476, %v481
    %v485 = vmul.f32 %v477, %v481
    %v486 = vlaneseq
    %v487 = vshrl.u32 %v486, 7
    %v488 = vsub.s32 1, %v487
    %v489 = vrot.slane %v85, %v488
    %v490 = vadd.f32 %v482, %v489
    %v491 = vadd.f32 %v483, %v489
    %v492 = vadd.f32 %v484, %v489
    %v493 = vadd.f32 %v485, %v489
    %v494 = vadd.f32 %v490, 3.0
    %v495 = vadd.f32 %v491, 3.0
    %v496 = vadd.f32 %v492, 3.0
    %v497 = vadd.f32 %v493, 3.0
    %v498 = vmax.f32 %v494, 0.0
    %v499 = vmax.f32 %v495, 0.0
    %v500 = vmax.f32 %v496, 0.0
    %v501 = vmax.f32 %v497, 0.0
    %v502 = vmin.f32 %v498, 6.0
    %v503 = vmin.f32 %v499, 6.0
    %v504 = vmin.f32 %v500, 6.0
    %v505 = vmin.f32 %v501, 6.0
    %v506 = vmul.f32 %v490, %v502
    %v507 = vmul.f32 %v491, %v503
    %v508 = vmul.f32 %v492, %v504
    %v509 = vmul.f32 %v493, %v505
    %v510 = vmul.f32 %v506, 0.16666667
    %v511 = vmul.f32 %v507, 0.16666667
    %v512 = vmul.f32 %v508, 0.16666667
    %v513 = vmul.f32 %v509, 0.16666667
    %vm514 = vcmask 261120
    %v516 = vsel %vm514, %v61, 0
    %v519 = vsel %vm514, %v62, 0
    %v522 = vsel %vm514, %v63, 0
    %v525 = vsel %vm514, %v64, 0
    %v528 = vsel %vm514, %v65, 0
    %v531 = vsel %vm514, %v66, 0
    %v534 = vsel %vm514, %v67, 0
    %v537 = vsel %vm514, %v68, 0
    %539 = vmatprep.subr.mxu0 0.0
    %540 = vmatpush1.msra.mxu0 %v510
    %541 = vmatprep.subr.mxu0 0.0
    %542 = vmatpush1.msra.mxu0 %v511
    %543 = vmatprep.subr.mxu0 0.0
    %544 = vmatpush1.msra.mxu0 %v512
    %545 = vmatprep.subr.mxu0 0.0
    %546 = vmatpush1.msra.mxu0 %v513
    %547 = vmatprep.subr.mxu0 0.0
    %548 = vmatpush1.msra.mxu0 0.0
    %549 = vmatprep.subr.mxu0 0.0
    %550 = vmatpush1.msra.mxu0 0.0
    %551 = vmatprep.subr.mxu0 0.0
    %552 = vmatpush1.msra.mxu0 0.0
    %553 = vmatprep.subr.mxu0 0.0
    %554 = vmatpush1.msra.mxu0 0.0
    %555 = vmatprep.subr.mxu0 0.0
    %556 = vmatpush1.msra.mxu0 0.0
    %557 = vmatprep.subr.mxu0 0.0
    %558 = vmatpush1.msra.mxu0 0.0
    %559 = vmatprep.subr.mxu0 0.0
    %560 = vmatpush1.msra.mxu0 0.0
    %561 = vmatprep.subr.mxu0 0.0
    %562 = vmatpush1.msra.mxu0 0.0
    %563 = vmatprep.subr.mxu0 0.0
    %564 = vmatpush1.msra.mxu0 0.0
    %565 = vmatprep.subr.mxu0 0.0
    %566 = vmatpush1.msra.mxu0 0.0
    %567 = vmatprep.subr.mxu0 0.0
    %568 = vmatpush1.msra.mxu0 0.0
    %569 = vmatprep.subr.mxu0 0.0
    %570 = vmatpush1.msra.mxu0 0.0
    %571 = vmatprep.subr.mxu0 0.0
    %572 = vmatpush1.msra.mxu0 0.0
    %573 = vmatprep.subr.mxu0 0.0
    %574 = vmatpush1.msra.mxu0 0.0
    %575 = vmatprep.subr.mxu0 0.0
    %576 = vmatpush1.msra.mxu0 0.0
    %577 = vmatprep.subr.mxu0 0.0
    %578 = vmatpush1.msra.mxu0 0.0
    %579 = vmatprep.subr.mxu0 0.0
    %580 = vmatpush1.msra.mxu0 0.0
    %581 = vmatprep.subr.mxu0 0.0
    %582 = vmatpush1.msra.mxu0 0.0
    %583 = vmatprep.subr.mxu0 0.0
    %584 = vmatpush1.msra.mxu0 0.0
    %585 = vmatprep.subr.mxu0 0.0
    %586 = vmatpush1.msra.mxu0 0.0
    %587 = vmatprep.subr.mxu0 0.0
    %588 = vmatpush1.msra.mxu0 0.0
    %589 = vmatprep.subr.mxu0 0.0
    %590 = vmatpush1.msra.mxu0 0.0
    %591 = vmatprep.subr.mxu0 0.0
    %592 = vmatpush1.msra.mxu0 0.0
    %593 = vmatprep.subr.mxu0 0.0
    %594 = vmatpush1.msra.mxu0 0.0
    %595 = vmatprep.subr.mxu0 0.0
    %596 = vmatpush1.msra.mxu0 0.0
    %597 = vmatprep.subr.mxu0 0.0
    %598 = vmatpush1.msra.mxu0 0.0
    %599 = vmatprep.subr.mxu0 0.0
    %600 = vmatpush1.msra.mxu0 0.0
    %601 = vmatprep.subr.mxu0 0.0
    %602 = vmatpush1.msra.mxu0 0.0
    %603 = vmatprep.mubr.f32.mxu0 0.0
    %604 = vmatmul.mubr.f32.gmra.mrb[0].mxu0 %v516
    %v605 = vpop.f32.mrb[0].mxu0
    %v606 = vadd.f32 0.0, %v605
    %v607 = vpop.f32.mrb[0].mxu0
    %608 = vmatprep.mubr.f32.mxu0 0.0
    %609 = vmatmul.mubr.f32.gmra.mrb[0].mxu0 %v519
    %v610 = vpop.f32.mrb[0].mxu0
    %v611 = vadd.f32 0.0, %v610
    %v612 = vpop.f32.mrb[0].mxu0
    %613 = vmatprep.mubr.f32.mxu0 0.0
    %614 = vmatmul.mubr.f32.gmra.mrb[0].mxu0 %v522
    %v615 = vpop.f32.mrb[0].mxu0
    %v616 = vadd.f32 0.0, %v615
    %v617 = vpop.f32.mrb[0].mxu0
    %618 = vmatprep.mubr.f32.mxu0 0.0
    %619 = vmatmul.mubr.f32.gmra.mrb[0].mxu0 %v525
    %v620 = vpop.f32.mrb[0].mxu0
    %v621 = vadd.f32 0.0, %v620
    %v622 = vpop.f32.mrb[0].mxu0
    %623 = vmatprep.mubr.f32.mxu0 0.0
    %624 = vmatmul.mubr.f32.gmra.mrb[0].mxu0 %v528
    %v625 = vpop.f32.mrb[0].mxu0
    %v626 = vadd.f32 0.0, %v625
    %v627 = vpop.f32.mrb[0].mxu0
    %628 = vmatprep.mubr.f32.mxu0 0.0
    %629 = vmatmul.mubr.f32.gmra.mrb[0].mxu0 %v531
    %v630 = vpop.f32.mrb[0].mxu0
    %v631 = vadd.f32 0.0, %v630
    %v632 = vpop.f32.mrb[0].mxu0
    %633 = vmatprep.mubr.f32.mxu0 0.0
    %634 = vmatmul.mubr.f32.gmra.mrb[0].mxu0 %v534
    %v635 = vpop.f32.mrb[0].mxu0
    %v636 = vadd.f32 0.0, %v635
    %v637 = vpop.f32.mrb[0].mxu0
    %638 = vmatprep.mubr.f32.mxu0 0.0
    %639 = vmatmul.mubr.f32.gmra.mrb[0].mxu0 %v537
    %v640 = vpop.f32.mrb[0].mxu0
    %v641 = vadd.f32 0.0, %v640
    %v642 = vpop.f32.mrb[0].mxu0
    %643 = vdwg.mxu0
    %v644 = vld [vmem:[#allocation5] sm:$0xff]
    %v645 = vld [vmem:[#allocation5 + $0x8] sm:$0xff]
    %v646 = vld [vmem:[#allocation5 + $0x10] sm:$0xff]
    %v647 = vld [vmem:[#allocation5 + $0x18] sm:$0xff]
    %v648 = vld [vmem:[#allocation5 + $0x20] sm:$0xff]
    %v649 = vld [vmem:[#allocation5 + $0x28] sm:$0xff]
    %v650 = vld [vmem:[#allocation5 + $0x30] sm:$0xff]
    %v651 = vld [vmem:[#allocation5 + $0x38] sm:$0xff]
    %v652 = vld [vmem:[#allocation5 + $0x40] sm:$0xff]
    %v653 = vld [vmem:[#allocation5 + $0x48] sm:$0xff]
    %v654 = vld [vmem:[#allocation5 + $0x50] sm:$0xff]
    %v655 = vld [vmem:[#allocation5 + $0x58] sm:$0xff]
    %v656 = vld [vmem:[#allocation5 + $0x60] sm:$0xff]
    %v657 = vld [vmem:[#allocation5 + $0x68] sm:$0xff]
    %v658 = vld [vmem:[#allocation5 + $0x70] sm:$0xff]
    %v659 = vld [vmem:[#allocation5 + $0x78] sm:$0xff]
    %v660 = vld [vmem:[#allocation5 + $0x80] sm:$0xff]
    %v661 = vld [vmem:[#allocation5 + $0x88] sm:$0xff]
    %v662 = vld [vmem:[#allocation5 + $0x90] sm:$0xff]
    %v663 = vld [vmem:[#allocation5 + $0x98] sm:$0xff]
    %v664 = vld [vmem:[#allocation5 + $0xa0] sm:$0xff]
    %v665 = vld [vmem:[#allocation5 + $0xa8] sm:$0xff]
    %v666 = vld [vmem:[#allocation5 + $0xb0] sm:$0xff]
    %v667 = vld [vmem:[#allocation5 + $0xb8] sm:$0xff]
    %v668 = vld [vmem:[#allocation5 + $0xc0] sm:$0xff]
    %v669 = vld [vmem:[#allocation5 + $0xc8] sm:$0xff]
    %v670 = vld [vmem:[#allocation5 + $0xd0] sm:$0xff]
    %v671 = vld [vmem:[#allocation5 + $0xd8] sm:$0xff]
    %v672 = vld [vmem:[#allocation5 + $0xe0] sm:$0xff]
    %v673 = vld [vmem:[#allocation5 + $0xe8] sm:$0xff]
    %v674 = vld [vmem:[#allocation5 + $0xf0] sm:$0xff]
    %v675 = vld [vmem:[#allocation5 + $0xf8] sm:$0xff]
    %v676 = vld [vmem:[#allocation5 + $0x100] sm:$0xff]
    %v677 = vld [vmem:[#allocation5 + $0x108] sm:$0xff]
    %v678 = vld [vmem:[#allocation5 + $0x110] sm:$0xff]
    %v679 = vld [vmem:[#allocation5 + $0x118] sm:$0xff]
    %v680 = vld [vmem:[#allocation5 + $0x120] sm:$0xff]
    %v681 = vld [vmem:[#allocation5 + $0x128] sm:$0xff]
    %v682 = vld [vmem:[#allocation5 + $0x130] sm:$0xff]
    %v683 = vld [vmem:[#allocation5 + $0x138] sm:$0xff]
    %v684 = vld [vmem:[#allocation5 + $0x140] sm:$0xff]
    %v685 = vld [vmem:[#allocation5 + $0x148] sm:$0xff]
    %v686 = vld [vmem:[#allocation5 + $0x150] sm:$0xff]
    %v687 = vld [vmem:[#allocation5 + $0x158] sm:$0xff]
    %v688 = vld [vmem:[#allocation5 + $0x160] sm:$0xff]
    %v689 = vld [vmem:[#allocation5 + $0x168] sm:$0xff]
    %v690 = vld [vmem:[#allocation5 + $0x170] sm:$0xff]
    %v691 = vld [vmem:[#allocation5 + $0x178] sm:$0xff]
    %692 = vmatprep.subr.mxu0 0.0
    %693 = vmatpush1.msra.mxu0 %v644
    %694 = vmatprep.subr.mxu0 0.0
    %695 = vmatpush1.msra.mxu0 %v645
    %696 = vmatprep.subr.mxu0 0.0
    %697 = vmatpush1.msra.mxu0 %v646
    %698 = vmatprep.subr.mxu0 0.0
    %699 = vmatpush1.msra.mxu0 %v647
    %700 = vmatprep.subr.mxu0 0.0
    %701 = vmatpush1.msra.mxu0 %v648
    %702 = vmatprep.subr.mxu0 0.0
    %703 = vmatpush1.msra.mxu0 %v649
    %704 = vmatprep.subr.mxu0 0.0
    %705 = vmatpush1.msra.mxu0 %v650
    %706 = vmatprep.subr.mxu0 0.0
    %707 = vmatpush1.msra.mxu0 %v651
    %708 = vmatprep.subr.mxu0 0.0
    %709 = vmatpush1.msra.mxu0 %v652
    %710 = vmatprep.subr.mxu0 0.0
    %711 = vmatpush1.msra.mxu0 %v653
    %712 = vmatprep.subr.mxu0 0.0
    %713 = vmatpush1.msra.mxu0 %v654
    %714 = vmatprep.subr.mxu0 0.0
    %715 = vmatpush1.msra.mxu0 %v655
    %716 = vmatprep.subr.mxu0 0.0
    %717 = vmatpush1.msra.mxu0 %v656
    %718 = vmatprep.subr.mxu0 0.0
    %719 = vmatpush1.msra.mxu0 %v657
    %720 = vmatprep.subr.mxu0 0.0
    %721 = vmatpush1.msra.mxu0 %v658
    %722 = vmatprep.subr.mxu0 0.0
    %723 = vmatpush1.msra.mxu0 %v659
    %724 = vmatprep.subr.mxu0 0.0
    %725 = vmatpush1.msra.mxu0 %v660
    %726 = vmatprep.subr.mxu0 0.0
    %727 = vmatpush1.msra.mxu0 %v661
    %728 = vmatprep.subr.mxu0 0.0
    %729 = vmatpush1.msra.mxu0 %v662
    %730 = vmatprep.subr.mxu0 0.0
    %731 = vmatpush1.msra.mxu0 %v663
    %732 = vmatprep.subr.mxu0 0.0
    %733 = vmatpush1.msra.mxu0 %v664
    %734 = vmatprep.subr.mxu0 0.0
    %735 = vmatpush1.msra.mxu0 %v665
    %736 = vmatprep.subr.mxu0 0.0
    %737 = vmatpush1.msra.mxu0 %v666
    %738 = vmatprep.subr.mxu0 0.0
    %739 = vmatpush1.msra.mxu0 %v667
    %740 = vmatprep.subr.mxu0 0.0
    %741 = vmatpush1.msra.mxu0 %v668
    %742 = vmatprep.subr.mxu0 0.0
    %743 = vmatpush1.msra.mxu0 %v669
    %744 = vmatprep.subr.mxu0 0.0
    %745 = vmatpush1.msra.mxu0 %v670
    %746 = vmatprep.subr.mxu0 0.0
    %747 = vmatpush1.msra.mxu0 %v671
    %748 = vmatprep.subr.mxu0 0.0
    %749 = vmatpush1.msra.mxu0 %v672
    %750 = vmatprep.subr.mxu0 0.0
    %751 = vmatpush1.msra.mxu0 %v673
    %752 = vmatprep.subr.mxu0 0.0
    %753 = vmatpush1.msra.mxu0 %v674
    %754 = vmatprep.subr.mxu0 0.0
    %755 = vmatpush1.msra.mxu0 %v675
    %756 = vmatprep.mubr.f32.mxu0 %v510
    %757 = vmatmul.mubr.f32.gmra.mrb[0].mxu0 %v606
    %v758 = vpop.f32.mrb[0].mxu0
    %v759 = vadd.f32 0.0, %v758
    %v760 = vpop.f32.mrb[0].mxu0
    %761 = vmatprep.mubr.f32.mxu0 %v511
    %762 = vmatmul.mubr.f32.gmra.mrb[0].mxu0 %v611
    %v763 = vpop.f32.mrb[0].mxu0
    %v764 = vadd.f32 0.0, %v763
    %v765 = vpop.f32.mrb[0].mxu0
    %766 = vmatprep.mubr.f32.mxu0 %v512
    %767 = vmatmul.mubr.f32.gmra.mrb[0].mxu0 %v616
    %v768 = vpop.f32.mrb[0].mxu0
    %v769 = vadd.f32 0.0, %v768
    %v770 = vpop.f32.mrb[0].mxu0
    %771 = vmatprep.mubr.f32.mxu0 %v513
    %772 = vmatmul.mubr.f32.gmra.mrb[0].mxu0 %v621
    %v773 = vpop.f32.mrb[0].mxu0
    %v774 = vadd.f32 0.0, %v773
    %v775 = vpop.f32.mrb[0].mxu0
    %776 = vdwg.mxu0
    %777 = vmatprep.subr.mxu0 0.0
    %778 = vmatpush1.msra.mxu0 %v676
    %779 = vmatprep.subr.mxu0 0.0
    %780 = vmatpush1.msra.mxu0 %v677
    %781 = vmatprep.subr.mxu0 0.0
    %782 = vmatpush1.msra.mxu0 %v678
    %783 = vmatprep.subr.mxu0 0.0
    %784 = vmatpush1.msra.mxu0 %v679
    %785 = vmatprep.subr.mxu0 0.0
    %786 = vmatpush1.msra.mxu0 %v680
    %787 = vmatprep.subr.mxu0 0.0
    %788 = vmatpush1.msra.mxu0 %v681
    %789 = vmatprep.subr.mxu0 0.0
    %790 = vmatpush1.msra.mxu0 %v682
    %791 = vmatprep.subr.mxu0 0.0
    %792 = vmatpush1.msra.mxu0 %v683
    %793 = vmatprep.subr.mxu0 0.0
    %794 = vmatpush1.msra.mxu0 %v684
    %795 = vmatprep.subr.mxu0 0.0
    %796 = vmatpush1.msra.mxu0 %v685
    %797 = vmatprep.subr.mxu0 0.0
    %798 = vmatpush1.msra.mxu0 %v686
    %799 = vmatprep.subr.mxu0 0.0
    %800 = vmatpush1.msra.mxu0 %v687
    %801 = vmatprep.subr.mxu0 0.0
    %802 = vmatpush1.msra.mxu0 %v688
    %803 = vmatprep.subr.mxu0 0.0
    %804 = vmatpush1.msra.mxu0 %v689
    %805 = vmatprep.subr.mxu0 0.0
    %806 = vmatpush1.msra.mxu0 %v690
    %807 = vmatprep.subr.mxu0 0.0
    %808 = vmatpush1.msra.mxu0 %v691
    %809 = vmatprep.subr.mxu0 0.0
    %810 = vmatpush1.msra.mxu0 0.0
    %811 = vmatprep.subr.mxu0 0.0
    %812 = vmatpush1.msra.mxu0 0.0
    %813 = vmatprep.subr.mxu0 0.0
    %814 = vmatpush1.msra.mxu0 0.0
    %815 = vmatprep.subr.mxu0 0.0
    %816 = vmatpush1.msra.mxu0 0.0
    %817 = vmatprep.subr.mxu0 0.0
    %818 = vmatpush1.msra.mxu0 0.0
    %819 = vmatprep.subr.mxu0 0.0
    %820 = vmatpush1.msra.mxu0 0.0
    %821 = vmatprep.subr.mxu0 0.0
    %822 = vmatpush1.msra.mxu0 0.0
    %823 = vmatprep.subr.mxu0 0.0
    %824 = vmatpush1.msra.mxu0 0.0
    %825 = vmatprep.subr.mxu0 0.0
    %826 = vmatpush1.msra.mxu0 0.0
    %827 = vmatprep.subr.mxu0 0.0
    %828 = vmatpush1.msra.mxu0 0.0
    %829 = vmatprep.subr.mxu0 0.0
    %830 = vmatpush1.msra.mxu0 0.0
    %831 = vmatprep.subr.mxu0 0.0
    %832 = vmatpush1.msra.mxu0 0.0
    %833 = vmatprep.subr.mxu0 0.0
    %834 = vmatpush1.msra.mxu0 0.0
    %835 = vmatprep.subr.mxu0 0.0
    %836 = vmatpush1.msra.mxu0 0.0
    %837 = vmatprep.subr.mxu0 0.0
    %838 = vmatpush1.msra.mxu0 0.0
    %839 = vmatprep.subr.mxu0 0.0
    %840 = vmatpush1.msra.mxu0 0.0
    %841 = vmatprep.mubr.f32.mxu0 0.0
    %842 = vmatmul.mubr.f32.gmra.mrb[0].mxu0 %v626
    %v843 = vpop.f32.mrb[0].mxu0
    %v844 = vadd.f32 %v759, %v843
    %v845 = vpop.f32.mrb[0].mxu0
    %846 = vmatprep.mubr.f32.mxu0 0.0
    %847 = vmatmul.mubr.f32.gmra.mrb[0].mxu0 %v631
    %v848 = vpop.f32.mrb[0].mxu0
    %v849 = vadd.f32 %v764, %v848
    %v850 = vpop.f32.mrb[0].mxu0
    %851 = vmatprep.mubr.f32.mxu0 0.0
    %852 = vmatmul.mubr.f32.gmra.mrb[0].mxu0 %v636
    %v853 = vpop.f32.mrb[0].mxu0
    %v854 = vadd.f32 %v769, %v853
    %v855 = vpop.f32.mrb[0].mxu0
    %856 = vmatprep.mubr.f32.mxu0 0.0
    %857 = vmatmul.mubr.f32.gmra.mrb[0].mxu0 %v641
    %v858 = vpop.f32.mrb[0].mxu0
    %v859 = vadd.f32 %v774, %v858
    %v860 = vpop.f32.mrb[0].mxu0
    %861 = vdwg.mxu0
    %v862 = vmul.f32 %v844, %v844
    %v863 = vmul.f32 %v849, %v849
    %v864 = vmul.f32 %v854, %v854
    %v865 = vmul.f32 %v859, %v859
    %866 = vmatprep.subr.mxu0 0.0
    %867 = vmatpush1.msra.mxu0 %v844
    %868 = vmatprep.subr.mxu0 0.0
    %869 = vmatpush1.msra.mxu0 %v849
    %870 = vmatprep.subr.mxu0 0.0
    %871 = vmatpush1.msra.mxu0 %v854
    %872 = vmatprep.subr.mxu0 0.0
    %873 = vmatpush1.msra.mxu0 %v859
    %874 = vmatprep.subr.mxu0 0.0
    %875 = vmatpush1.msra.mxu0 %v862
    %876 = vmatprep.subr.mxu0 0.0
    %877 = vmatpush1.msra.mxu0 %v863
    %878 = vmatprep.subr.mxu0 0.0
    %879 = vmatpush1.msra.mxu0 %v864
    %880 = vmatprep.subr.mxu0 0.0
    %881 = vmatpush1.msra.mxu0 %v865
    %882 = vmatprep.subr.mxu0 0.0
    %883 = vmatpush1.msra.mxu0 0.0
    %884 = vmatprep.subr.mxu0 0.0
    %885 = vmatpush1.msra.mxu0 0.0
    %886 = vmatprep.subr.mxu0 0.0
    %887 = vmatpush1.msra.mxu0 0.0
    %888 = vmatprep.subr.mxu0 0.0
    %889 = vmatpush1.msra.mxu0 0.0
    %890 = vmatprep.subr.mxu0 0.0
    %891 = vmatpush1.msra.mxu0 0.0
    %892 = vmatprep.subr.mxu0 0.0
    %893 = vmatpush1.msra.mxu0 0.0
    %894 = vmatprep.subr.mxu0 0.0
    %895 = vmatpush1.msra.mxu0 0.0
    %896 = vmatprep.subr.mxu0 0.0
    %897 = vmatpush1.msra.mxu0 0.0
    %898 = vmatprep.subr.mxu0 0.0
    %899 = vmatpush1.msra.mxu0 0.0
    %900 = vmatprep.subr.mxu0 0.0
    %901 = vmatpush1.msra.mxu0 0.0
    %902 = vmatprep.subr.mxu0 0.0
    %903 = vmatpush1.msra.mxu0 0.0
    %904 = vmatprep.subr.mxu0 0.0
    %905 = vmatpush1.msra.mxu0 0.0
    %906 = vmatprep.subr.mxu0 0.0
    %907 = vmatpush1.msra.mxu0 0.0
    %908 = vmatprep.subr.mxu0 0.0
    %909 = vmatpush1.msra.mxu0 0.0
    %910 = vmatprep.subr.mxu0 0.0
    %911 = vmatpush1.msra.mxu0 0.0
    %912 = vmatprep.subr.mxu0 0.0
    %913 = vmatpush1.msra.mxu0 0.0
    %914 = vmatprep.subr.mxu0 0.0
    %915 = vmatpush1.msra.mxu0 0.0
    %916 = vmatprep.subr.mxu0 0.0
    %917 = vmatpush1.msra.mxu0 0.0
    %918 = vmatprep.subr.mxu0 0.0
    %919 = vmatpush1.msra.mxu0 0.0
    %920 = vmatprep.subr.mxu0 0.0
    %921 = vmatpush1.msra.mxu0 0.0
    %922 = vmatprep.subr.mxu0 0.0
    %923 = vmatpush1.msra.mxu0 0.0
    %924 = vmatprep.subr.mxu0 0.0
    %925 = vmatpush1.msra.mxu0 0.0
    %926 = vmatprep.subr.mxu0 0.0
    %927 = vmatpush1.msra.mxu0 0.0
    %928 = vmatprep.subr.mxu0 0.0
    %929 = vmatpush1.msra.mxu0 0.0
    %930 = vmatprep.mubr.f32.mxu0 0.0
    %931 = vmatmul.mubr.f32.gmra.mrb[0].mxu0 %v217
    %v932 = vpop.f32.mrb[0].mxu0
    %v933 = vadd.f32 0.0, %v932
    %v934 = vpop.f32.mrb[0].mxu0
    %935 = vmatprep.mubr.f32.mxu0 0.0
    %936 = vmatmul.mubr.f32.gmra.mrb[0].mxu0 %v220
    %v937 = vpop.f32.mrb[0].mxu0
    %v938 = vadd.f32 0.0, %v937
    %v939 = vpop.f32.mrb[0].mxu0
    %940 = vmatprep.mubr.f32.mxu0 0.0
    %941 = vmatmul.mubr.f32.gmra.mrb[0].mxu0 %v223
    %v942 = vpop.f32.mrb[0].mxu0
    %v943 = vadd.f32 0.0, %v942
    %v944 = vpop.f32.mrb[0].mxu0
    %945 = vmatprep.mubr.f32.mxu0 0.0
    %946 = vmatmul.mubr.f32.gmra.mrb[0].mxu0 %v226
    %v947 = vpop.f32.mrb[0].mxu0
    %v948 = vadd.f32 0.0, %v947
    %v949 = vpop.f32.mrb[0].mxu0
    %950 = vmatprep.mubr.f32.mxu0 0.0
    %951 = vmatmul.mubr.f32.gmra.mrb[0].mxu0 %v229
    %v952 = vpop.f32.mrb[0].mxu0
    %v953 = vadd.f32 0.0, %v952
    %v954 = vpop.f32.mrb[0].mxu0
    %955 = vmatprep.mubr.f32.mxu0 0.0
    %956 = vmatmul.mubr.f32.gmra.mrb[0].mxu0 %v232
    %v957 = vpop.f32.mrb[0].mxu0
    %v958 = vadd.f32 0.0, %v957
    %v959 = vpop.f32.mrb[0].mxu0
    %960 = vmatprep.mubr.f32.mxu0 0.0
    %961 = vmatmul.mubr.f32.gmra.mrb[0].mxu0 %v235
    %v962 = vpop.f32.mrb[0].mxu0
    %v963 = vadd.f32 0.0, %v962
    %v964 = vpop.f32.mrb[0].mxu0
    %965 = vmatprep.mubr.f32.mxu0 0.0
    %966 = vmatmul.mubr.f32.gmra.mrb[0].mxu0 %v238
    %v967 = vpop.f32.mrb[0].mxu0
    %v968 = vadd.f32 0.0, %v967
    %v969 = vpop.f32.mrb[0].mxu0
    %970 = vdwg.mxu0
    %971 = vmatprep.subr.mxu0 0.0
    %972 = vmatpush1.msra.mxu0 %v69
    %973 = vmatprep.subr.mxu0 0.0
    %974 = vmatpush1.msra.mxu0 %v70
    %975 = vmatprep.subr.mxu0 0.0
    %976 = vmatpush1.msra.mxu0 %v71
    %977 = vmatprep.subr.mxu0 0.0
    %978 = vmatpush1.msra.mxu0 %v72
    %979 = vmatprep.subr.mxu0 0.0
    %980 = vmatpush1.msra.mxu0 %v73
    %981 = vmatprep.subr.mxu0 0.0
    %982 = vmatpush1.msra.mxu0 %v74
    %983 = vmatprep.subr.mxu0 0.0
    %984 = vmatpush1.msra.mxu0 %v75
    %985 = vmatprep.subr.mxu0 0.0
    %986 = vmatpush1.msra.mxu0 %v76
    %987 = vmatprep.subr.mxu0 0.0
    %988 = vmatpush1.msra.mxu0 %v77
    %989 = vmatprep.subr.mxu0 0.0
    %990 = vmatpush1.msra.mxu0 %v78
    %991 = vmatprep.subr.mxu0 0.0
    %992 = vmatpush1.msra.mxu0 %v79
    %993 = vmatprep.subr.mxu0 0.0
    %994 = vmatpush1.msra.mxu0 %v80
    %995 = vmatprep.subr.mxu0 0.0
    %996 = vmatpush1.msra.mxu0 %v81
    %997 = vmatprep.subr.mxu0 0.0
    %998 = vmatpush1.msra.mxu0 %v82
    %999 = vmatprep.subr.mxu0 0.0
    %1000 = vmatpush1.msra.mxu0 %v83
    %1001 = vmatprep.subr.mxu0 0.0
    %1002 = vmatpush1.msra.mxu0 %v84
    %1003 = vmatprep.subr.mxu0 0.0
    %1004 = vmatpush1.msra.mxu0 0.0
    %1005 = vmatprep.subr.mxu0 0.0
    %1006 = vmatpush1.msra.mxu0 0.0
    %1007 = vmatprep.subr.mxu0 0.0
    %1008 = vmatpush1.msra.mxu0 0.0
    %1009 = vmatprep.subr.mxu0 0.0
    %1010 = vmatpush1.msra.mxu0 0.0
    %1011 = vmatprep.subr.mxu0 0.0
    %1012 = vmatpush1.msra.mxu0 0.0
    %1013 = vmatprep.subr.mxu0 0.0
    %1014 = vmatpush1.msra.mxu0 0.0
    %1015 = vmatprep.subr.mxu0 0.0
    %1016 = vmatpush1.msra.mxu0 0.0
    %1017 = vmatprep.subr.mxu0 0.0
    %1018 = vmatpush1.msra.mxu0 0.0
    %1019 = vmatprep.subr.mxu0 0.0
    %1020 = vmatpush1.msra.mxu0 0.0
    %1021 = vmatprep.subr.mxu0 0.0
    %1022 = vmatpush1.msra.mxu0 0.0
    %1023 = vmatprep.subr.mxu0 0.0
    %1024 = vmatpush1.msra.mxu0 0.0
    %1025 = vmatprep.subr.mxu0 0.0
    %1026 = vmatpush1.msra.mxu0 0.0
    %1027 = vmatprep.subr.mxu0 0.0
    %1028 = vmatpush1.msra.mxu0 0.0
    %1029 = vmatprep.subr.mxu0 0.0
    %1030 = vmatpush1.msra.mxu0 0.0
    %1031 = vmatprep.subr.mxu0 0.0
    %1032 = vmatpush1.msra.mxu0 0.0
    %1033 = vmatprep.subr.mxu0 0.0
    %1034 = vmatpush1.msra.mxu0 0.0
    %1035 = vmatprep.mubr.f32.mxu0 0.0
    %1036 = vmatmul.mubr.f32.gmra.mrb[0].mxu0 %v933
    %v1037 = vpop.f32.mrb[0].mxu0
    %v1038 = vadd.f32 0.0, %v1037
    %v1039 = vpop.f32.mrb[0].mxu0
    %1040 = vmatprep.mubr.f32.mxu0 0.0
    %1041 = vmatmul.mubr.f32.gmra.mrb[0].mxu0 %v938
    %v1042 = vpop.f32.mrb[0].mxu0
    %v1043 = vadd.f32 0.0, %v1042
    %v1044 = vpop.f32.mrb[0].mxu0
    %1045 = vmatprep.mubr.f32.mxu0 0.0
    %1046 = vmatmul.mubr.f32.gmra.mrb[0].mxu0 %v943
    %v1047 = vpop.f32.mrb[0].mxu0
    %v1048 = vadd.f32 0.0, %v1047
    %v1049 = vpop.f32.mrb[0].mxu0
    %1050 = vmatprep.mubr.f32.mxu0 0.0
    %1051 = vmatmul.mubr.f32.gmra.mrb[0].mxu0 %v948
    %v1052 = vpop.f32.mrb[0].mxu0
    %v1053 = vadd.f32 0.0, %v1052
    %v1054 = vpop.f32.mrb[0].mxu0
    %1055 = vmatprep.mubr.f32.mxu0 0.0
    %1056 = vmatmul.mubr.f32.gmra.mrb[0].mxu0 %v953
    %v1057 = vpop.f32.mrb[0].mxu0
    %v1058 = vadd.f32 0.0, %v1057
    %v1059 = vpop.f32.mrb[0].mxu0
    %1060 = vmatprep.mubr.f32.mxu0 0.0
    %1061 = vmatmul.mubr.f32.gmra.mrb[0].mxu0 %v958
    %v1062 = vpop.f32.mrb[0].mxu0
    %v1063 = vadd.f32 0.0, %v1062
    %v1064 = vpop.f32.mrb[0].mxu0
    %1065 = vmatprep.mubr.f32.mxu0 0.0
    %1066 = vmatmul.mubr.f32.gmra.mrb[0].mxu0 %v963
    %v1067 = vpop.f32.mrb[0].mxu0
    %v1068 = vadd.f32 0.0, %v1067
    %v1069 = vpop.f32.mrb[0].mxu0
    %1070 = vmatprep.mubr.f32.mxu0 0.0
    %1071 = vmatmul.mubr.f32.gmra.mrb[0].mxu0 %v968
    %v1072 = vpop.f32.mrb[0].mxu0
    %v1073 = vadd.f32 0.0, %v1072
    %v1074 = vpop.f32.mrb[0].mxu0
    %1075 = vdwg.mxu0
    %v1076 = vmul.f32 %v1038, %v1038
    %v1077 = vmul.f32 %v1043, %v1043
    %v1078 = vmul.f32 %v1048, %v1048
    %v1079 = vmul.f32 %v1053, %v1053
    %v1080 = vsub.f32 %v1058, %v1076
    %v1081 = vsub.f32 %v1063, %v1077
    %v1082 = vsub.f32 %v1068, %v1078
    %v1083 = vsub.f32 %v1073, %v1079
    %v1084 = vmax.f32 %v1080, 0.0
    %v1085 = vmax.f32 %v1081, 0.0
    %v1086 = vmax.f32 %v1082, 0.0
    %v1087 = vmax.f32 %v1083, 0.0
    %v1088 = vsub.f32 %v844, %v1038
    %v1089 = vsub.f32 %v849, %v1043
    %v1090 = vsub.f32 %v854, %v1048
    %v1091 = vsub.f32 %v859, %v1053
    %v1092 = vadd.f32 %v1084, 1e-05
    %v1093 = vadd.f32 %v1085, 1e-05
    %v1094 = vadd.f32 %v1086, 1e-05
    %v1095 = vadd.f32 %v1087, 1e-05
    %v1096 = vrsqrt.pop %v1092
    %v1097 = vrsqrt.pop %v1093
    %v1098 = vrsqrt.pop %v1094
    %v1099 = vrsqrt.pop %v1095
    %v1100 = vmul.f32 %v1088, %v1096
    %v1101 = vmul.f32 %v1089, %v1097
    %v1102 = vmul.f32 %v1090, %v1098
    %v1103 = vmul.f32 %v1091, %v1099
    %v1104 = vlaneseq
    %v1105 = vshrl.u32 %v1104, 7
    %v1106 = vsub.s32 2, %v1105
    %v1107 = vrot.slane %v85, %v1106
    %v1108 = vmul.f32 %v1100, %v1107
    %v1109 = vmul.f32 %v1101, %v1107
    %v1110 = vmul.f32 %v1102, %v1107
    %v1111 = vmul.f32 %v1103, %v1107
    %v1112 = vlaneseq
    %v1113 = vshrl.u32 %v1112, 7
    %v1114 = vsub.s32 3, %v1113
    %v1115 = vrot.slane %v85, %v1114
    %v1116 = vadd.f32 %v1108, %v1115
    %v1117 = vadd.f32 %v1109, %v1115
    %v1118 = vadd.f32 %v1110, %v1115
    %v1119 = vadd.f32 %v1111, %v1115
    %v1120 = vadd.f32 %v1116, 3.0
    %v1121 = vadd.f32 %v1117, 3.0
    %v1122 = vadd.f32 %v1118, 3.0
    %v1123 = vadd.f32 %v1119, 3.0
    %v1124 = vmax.f32 %v1120, 0.0
    %v1125 = vmax.f32 %v1121, 0.0
    %v1126 = vmax.f32 %v1122, 0.0
    %v1127 = vmax.f32 %v1123, 0.0
    %v1128 = vmin.f32 %v1124, 6.0
    %v1129 = vmin.f32 %v1125, 6.0
    %v1130 = vmin.f32 %v1126, 6.0
    %v1131 = vmin.f32 %v1127, 6.0
    %v1132 = vmul.f32 %v1116, %v1128
    %v1133 = vmul.f32 %v1117, %v1129
    %v1134 = vmul.f32 %v1118, %v1130
    %v1135 = vmul.f32 %v1119, %v1131
    %v1136 = vmul.f32 %v1132, 0.16666667
    %v1137 = vmul.f32 %v1133, 0.16666667
    %v1138 = vmul.f32 %v1134, 0.16666667
    %v1139 = vmul.f32 %v1135, 0.16666667
    %v1140 = vld [vmem:[#allocation5 + $0x180] sm:$0xff]
    %v1141 = vld [vmem:[#allocation5 + $0x188] sm:$0xff]
    %v1142 = vld [vmem:[#allocation5 + $0x190] sm:$0xff]
    %v1143 = vld [vmem:[#allocation5 + $0x198] sm:$0xff]
    %v1144 = vld [vmem:[#allocation5 + $0x1a0] sm:$0xff]
    %v1145 = vld [vmem:[#allocation5 + $0x1a8] sm:$0xff]
    %v1146 = vld [vmem:[#allocation5 + $0x1b0] sm:$0xff]
    %v1147 = vld [vmem:[#allocation5 + $0x1b8] sm:$0xff]
    %v1148 = vld [vmem:[#allocation5 + $0x1c0] sm:$0xff]
    %v1149 = vld [vmem:[#allocation5 + $0x1c8] sm:$0xff]
    %v1150 = vld [vmem:[#allocation5 + $0x1d0] sm:$0xff]
    %v1151 = vld [vmem:[#allocation5 + $0x1d8] sm:$0xff]
    %v1152 = vld [vmem:[#allocation5 + $0x1e0] sm:$0xff]
    %v1153 = vld [vmem:[#allocation5 + $0x1e8] sm:$0xff]
    %v1154 = vld [vmem:[#allocation5 + $0x1f0] sm:$0xff]
    %v1155 = vld [vmem:[#allocation5 + $0x1f8] sm:$0xff]
    %1156 = vmatprep.subr.mxu0 0.0
    %1157 = vmatpush1.msra.mxu0 %v1140
    %1158 = vmatprep.subr.mxu0 0.0
    %1159 = vmatpush1.msra.mxu0 %v1141
    %1160 = vmatprep.subr.mxu0 0.0
    %1161 = vmatpush1.msra.mxu0 %v1142
    %1162 = vmatprep.subr.mxu0 0.0
    %1163 = vmatpush1.msra.mxu0 %v1143
    %1164 = vmatprep.subr.mxu0 0.0
    %1165 = vmatpush1.msra.mxu0 %v1144
    %1166 = vmatprep.subr.mxu0 0.0
    %1167 = vmatpush1.msra.mxu0 %v1145
    %1168 = vmatprep.subr.mxu0 0.0
    %1169 = vmatpush1.msra.mxu0 %v1146
    %1170 = vmatprep.subr.mxu0 0.0
    %1171 = vmatpush1.msra.mxu0 %v1147
    %1172 = vmatprep.subr.mxu0 0.0
    %1173 = vmatpush1.msra.mxu0 %v1148
    %1174 = vmatprep.subr.mxu0 0.0
    %1175 = vmatpush1.msra.mxu0 %v1149
    %1176 = vmatprep.subr.mxu0 0.0
    %1177 = vmatpush1.msra.mxu0 %v1150
    %1178 = vmatprep.subr.mxu0 0.0
    %1179 = vmatpush1.msra.mxu0 %v1151
    %1180 = vmatprep.subr.mxu0 0.0
    %1181 = vmatpush1.msra.mxu0 %v1152
    %1182 = vmatprep.subr.mxu0 0.0
    %1183 = vmatpush1.msra.mxu0 %v1153
    %1184 = vmatprep.subr.mxu0 0.0
    %1185 = vmatpush1.msra.mxu0 %v1154
    %1186 = vmatprep.subr.mxu0 0.0
    %1187 = vmatpush1.msra.mxu0 %v1155
    %1188 = vmatprep.subr.mxu0 0.0
    %1189 = vmatpush1.msra.mxu0 0.0
    %1190 = vmatprep.subr.mxu0 0.0
    %1191 = vmatpush1.msra.mxu0 0.0
    %1192 = vmatprep.subr.mxu0 0.0
    %1193 = vmatpush1.msra.mxu0 0.0
    %1194 = vmatprep.subr.mxu0 0.0
    %1195 = vmatpush1.msra.mxu0 0.0
    %1196 = vmatprep.subr.mxu0 0.0
    %1197 = vmatpush1.msra.mxu0 0.0
    %1198 = vmatprep.subr.mxu0 0.0
    %1199 = vmatpush1.msra.mxu0 0.0
    %1200 = vmatprep.subr.mxu0 0.0
    %1201 = vmatpush1.msra.mxu0 0.0
    %1202 = vmatprep.subr.mxu0 0.0
    %1203 = vmatpush1.msra.mxu0 0.0
    %1204 = vmatprep.subr.mxu0 0.0
    %1205 = vmatpush1.msra.mxu0 0.0
    %1206 = vmatprep.subr.mxu0 0.0
    %1207 = vmatpush1.msra.mxu0 0.0
    %1208 = vmatprep.subr.mxu0 0.0
    %1209 = vmatpush1.msra.mxu0 0.0
    %1210 = vmatprep.subr.mxu0 0.0
    %1211 = vmatpush1.msra.mxu0 0.0
    %1212 = vmatprep.subr.mxu0 0.0
    %1213 = vmatpush1.msra.mxu0 0.0
    %1214 = vmatprep.subr.mxu0 0.0
    %1215 = vmatpush1.msra.mxu0 0.0
    %1216 = vmatprep.subr.mxu0 0.0
    %1217 = vmatpush1.msra.mxu0 0.0
    %1218 = vmatprep.subr.mxu0 0.0
    %1219 = vmatpush1.msra.mxu0 0.0
    %1220 = vmatprep.mubr.f32.mxu0 0.0
    %1221 = vmatmul.mubr.f32.gmra.mrb[0].mxu0 %v1136
    %v1222 = vpop.f32.mrb[0].mxu0
    %v1223 = vadd.f32 %v208, %v1222
    %v1224 = vpop.f32.mrb[0].mxu0
    %1225 = vmatprep.mubr.f32.mxu0 0.0
    %1226 = vmatmul.mubr.f32.gmra.mrb[0].mxu0 %v1137
    %v1227 = vpop.f32.mrb[0].mxu0
    %v1228 = vadd.f32 %v209, %v1227
    %v1229 = vpop.f32.mrb[0].mxu0
    %1230 = vmatprep.mubr.f32.mxu0 0.0
    %1231 = vmatmul.mubr.f32.gmra.mrb[0].mxu0 %v1138
    %v1232 = vpop.f32.mrb[0].mxu0
    %v1233 = vadd.f32 %v210, %v1232
    %v1234 = vpop.f32.mrb[0].mxu0
    %1235 = vmatprep.mubr.f32.mxu0 0.0
    %1236 = vmatmul.mubr.f32.gmra.mrb[0].mxu0 %v1139
    %v1237 = vpop.f32.mrb[0].mxu0
    %v1238 = vadd.f32 %v211, %v1237
    %v1239 = vpop.f32.mrb[0].mxu0
    %1240 = vdwg.mxu0
    %1241 = vadd.xlane.f32.xlu0 %v1223
    %v1242 = vpop.xlane.xlu0 %1241
    %1243 = vadd.xlane.f32.xlu0 %v1228
    %v1244 = vpop.xlane.xlu0 %1243
    %1245 = vadd.xlane.f32.xlu0 %v1233
    %v1246 = vpop.xlane.xlu0 %1245
    %1247 = vadd.xlane.f32.xlu0 %v1238
    %v1248 = vpop.xlane.xlu0 %1247
    %v1249 = vrcp.pop 128.0
    %v1250 = vmul.f32 %v1242, %v1249
    %v1251 = vmul.f32 %v1244, %v1249
    %v1252 = vmul.f32 %v1246, %v1249
    %v1253 = vmul.f32 %v1248, %v1249
    %v1254 = vsub.f32 %v1223, %v1250
    %v1255 = vsub.f32 %v1228, %v1251
    %v1256 = vsub.f32 %v1233, %v1252
    %v1257 = vsub.f32 %v1238, %v1253
    %v1258 = vmul.f32 %v1254, %v1254
    %v1259 = vmul.f32 %v1255, %v1255
    %v1260 = vmul.f32 %v1256, %v1256
    %v1261 = vmul.f32 %v1257, %v1257
    %1262 = vadd.xlane.f32.xlu0 %v1258
    %v1263 = vpop.xlane.xlu0 %1262
    %1264 = vadd.xlane.f32.xlu0 %v1259
    %v1265 = vpop.xlane.xlu0 %1264
    %1266 = vadd.xlane.f32.xlu0 %v1260
    %v1267 = vpop.xlane.xlu0 %1266
    %1268 = vadd.xlane.f32.xlu0 %v1261
    %v1269 = vpop.xlane.xlu0 %1268
    %v1270 = vmul.f32 %v1263, %v1249
    %v1271 = vmul.f32 %v1265, %v1249
    %v1272 = vmul.f32 %v1267, %v1249
    %v1273 = vmul.f32 %v1269, %v1249
    %v1274 = vadd.f32 %v1270, 1e-05
    %v1275 = vadd.f32 %v1271, 1e-05
    %v1276 = vadd.f32 %v1272, 1e-05
    %v1277 = vadd.f32 %v1273, 1e-05
    %v1278 = vrsqrt.pop %v1274
    %v1279 = vrsqrt.pop %v1275
    %v1280 = vrsqrt.pop %v1276
    %v1281 = vrsqrt.pop %v1277
    %v1282 = vmul.f32 %v1254, %v1278
    %v1283 = vmul.f32 %v1255, %v1279
    %v1284 = vmul.f32 %v1256, %v1280
    %v1285 = vmul.f32 %v1257, %v1281
    %v1286 = vlaneseq
    %v1287 = vshrl.u32 %v1286, 7
    %v1288 = vsub.s32 5, %v1287
    %v1289 = vrot.slane %v85, %v1288
    %v1290 = vmul.f32 %v1282, %v1289
    %v1291 = vmul.f32 %v1283, %v1289
    %v1292 = vmul.f32 %v1284, %v1289
    %v1293 = vmul.f32 %v1285, %v1289
    %v1294 = vlaneseq
    %v1295 = vshrl.u32 %v1294, 7
    %v1296 = vsub.s32 6, %v1295
    %v1297 = vrot.slane %v85, %v1296
    %v1298 = vadd.f32 %v1290, %v1297
    %v1299 = vadd.f32 %v1291, %v1297
    %v1300 = vadd.f32 %v1292, %v1297
    %v1301 = vadd.f32 %v1293, %v1297
    %v1302 = vadd.f32 %v1298, 3.0
    %v1303 = vadd.f32 %v1299, 3.0
    %v1304 = vadd.f32 %v1300, 3.0
    %v1305 = vadd.f32 %v1301, 3.0
    %v1306 = vmax.f32 %v1302, 0.0
    %v1307 = vmax.f32 %v1303, 0.0
    %v1308 = vmax.f32 %v1304, 0.0
    %v1309 = vmax.f32 %v1305, 0.0
    %v1310 = vmin.f32 %v1306, 6.0
    %v1311 = vmin.f32 %v1307, 6.0
    %v1312 = vmin.f32 %v1308, 6.0
    %v1313 = vmin.f32 %v1309, 6.0
    %v1314 = vmul.f32 %v1298, %v1310
    %v1315 = vmul.f32 %v1299, %v1311
    %v1316 = vmul.f32 %v1300, %v1312
    %v1317 = vmul.f32 %v1301, %v1313
    %v1318 = vmul.f32 %v1314, 0.16666667
    %v1319 = vmul.f32 %v1315, 0.16666667
    %v1320 = vmul.f32 %v1316, 0.16666667
    %v1321 = vmul.f32 %v1317, 0.16666667
    %1322 = vst [vmem:[#allocation7] sm:$0xff] %v1318
    %1323 = vst [vmem:[#allocation7 + $0x8] sm:$0xff] %v1319
    %1324 = vst [vmem:[#allocation7 + $0x10] sm:$0xff] %v1320
    %1325 = vst [vmem:[#allocation7 + $0x18] sm:$0xff] %v1321
    // Predicated region
    $region30: #{tpu_custom_call.1} parent=1 // pred_check
      _
    $region31: #{tpu_custom_call.1} parent=1 // pred_check_branch
      %1327 = sbr.rel (0) target = $region33
    $region32: #{tpu_custom_call.1} parent=1 // pred_region
      %s1329 = ssub.s32 512, 512
      %1330 = vsyncadd [#allocation4], %s1329
      %s1331 = sshll.u32 [#allocation7], 4
      %s1332 = int_to_ptr.vmem [resolvable:$true] %s1331
      %1337 = dma.vmem_to_hbm [thread:$0]  %s1332, 512, %s5, [#allocation4], 128, 128, 8
    $region33: #{tpu_custom_call.1} parent=1 // pred_fallthru
      _
    // Predicated region
    $region34: #{tpu_custom_call.1} parent=1 // pred_check
      _
    $region35: #{tpu_custom_call.1} parent=1 // pred_check_branch
      %1339 = sbr.rel (0) target = $region37
    $region36: #{tpu_custom_call.1} parent=1 // pred_region
      %1340 = dma.done [#allocation4], 512
    $region37: #{tpu_custom_call.1} parent=1 // pred_fallthru
      _
    %1341 = vsyncpa [#allocation3], 1
    %1342 = vsyncpa [#allocation6], 1
    %1343 = vsyncpa [#allocation4], 1

</llo_original>
